<compile_context>
chip_gen: v7x
topology: tpu7x:2x2x1
jax: 0.10.0
libtpu: 0.0.40
codegen_flags: <defaults>
</compile_context>

<pallas_src>
import jax
import jax.numpy as jnp
from jax.experimental import pallas as pl
from jax.experimental.pallas import tpu as pltpu


# ---------------------------------------------------------------------------------------
# Kernel: one grid step handles a (bb, n, T) slab of batches.
# ---------------------------------------------------------------------------------------
def _li_kernel(h_ref, inp_ref, wc_ref, we_ref, bias_ref, dttau_ref, *out_refs):
    mu_ref = out_refs[0]
    chem_ref = out_refs[1] if len(out_refs) == 3 else None
    elec_ref = out_refs[2] if len(out_refs) == 3 else None

    wc = wc_ref[...]            # (n, n) chemical weights
    we = we_ref[...]            # (n, n) electrical weights, rowsum folded into diagonal
    bias = bias_ref[...]        # (n, 1)
    dttau = dttau_ref[...]      # (n, 1) dt / tau

    bb, _, T = h_ref.shape
    # t == 0 mask built once on a single (1, T) row; jnp.where broadcasts over sublanes.
    col0 = jax.lax.broadcasted_iota(jnp.int32, (1, T), 1) == 0

    for b in range(bb):                                   # small static unroll (<= 8)
        # One-step time shift inside this batch's (n, T) slab:
        #   x[:, 0] = 0 ; x[:, t] = hidden[:, t-1]   (XLU roll + zero the t==0 column)
        x = jnp.where(col0, 0.0, pltpu.roll(h_ref[b], shift=1, axis=1))

        # Chemical synaptic input: W_c @ relu(x)                          (MXU)
        chem = jnp.dot(wc, jnp.maximum(x, 0.0), preferred_element_type=jnp.float32)
        # Electrical (gap junction) input: (W_e - diag(rowsum W_e)) @ x   (MXU)
        elec = jnp.dot(we, x, preferred_element_type=jnp.float32)

        mu_ref[b] = dttau * (chem + elec + bias + inp_ref[b] - x) + x
        if chem_ref is not None:
            chem_ref[b] = chem
            elec_ref[b] = elec


# ---------------------------------------------------------------------------------------
# Tiling helpers (per-generation VMEM aware).
# ---------------------------------------------------------------------------------------
def _vmem_capacity_bytes():
    try:
        return int(pltpu.get_tpu_info().vmem_capacity_bytes)
    except Exception:
        return 64 * 1024 * 1024            # conservative fallback (v7x per-core VMEM)


def _detect_num_cores():
    """Best-effort TensorCore count (v7x has 2 per chip). Defaults to 1."""
    try:
        info = pltpu.get_tpu_info()
        cores = 1
        for name in ("num_cores", "core_count", "num_tensorcores", "tensorcore_count"):
            v = getattr(info, name, None)
            if isinstance(v, int):
                cores = max(cores, v)
        return cores
    except Exception:
        return 1


_MAX_UNROLL = 8   # bound on the static in-kernel batch unroll (code size)


def _pick_batch_block(B, n, T, n_out, budget_bytes):
    """Batches per grid step: largest divisor of B (<= _MAX_UNROLL) whose pipelined
    working set fits the VMEM budget, preferring >= 2 (and even) grid steps so a
    dual-TensorCore chip (v7x) has work for both cores."""
    npad = -(-n // 8) * 8
    tpad = -(-T // 128) * 128
    w_lane = -(-n // 128) * 128
    # streamed blocks (hidden, input, outputs) are double-buffered by the pipeline
    per_batch = (2 + n_out) * 2 * npad * tpad * 4
    # constants are single-buffered: two (n, n) weights + two (n, 1)->(n, 128) vectors
    fixed = (2 * npad * w_lane + 2 * npad * 128) * 4
    fits = lambda bb: fixed + bb * per_batch <= budget_bytes
    divs = [d for d in range(1, B + 1) if B % d == 0]
    cand = ([d for d in divs if fits(d) and d <= _MAX_UNROLL and B // d >= 2]
            or [d for d in divs if fits(d) and d <= _MAX_UNROLL]
            or [1])
    even = [d for d in cand if (B // d) % 2 == 0]
    return max(even or cand)


# ---------------------------------------------------------------------------------------
# Wrapper
# ---------------------------------------------------------------------------------------
def leaky_integrator_current_forward(inp, hidden_states, sparsity_c, magnitudes_c,
                                     sparsity_e, magnitudes_e, bias, tau, dt,
                                     return_diagnostics=True):
    """inp, hidden_states: (B, n, T) float32.
    Returns (mu, chem_in, elec_in) (module semantics), or just mu when
    return_diagnostics=False (drops 2 of 3 output arrays of HBM traffic)."""
    B, n, T = inp.shape
    n_out = 3 if return_diagnostics else 1

    # ---- one-time parameter prep (hoisted out of the kernel) --------------------------
    W_c = (sparsity_c * (magnitudes_c * 10.0)).astype(jnp.float32)
    W_e = (sparsity_e * ((magnitudes_e + magnitudes_e.T) * 0.01)).astype(jnp.float32)
    # Fold the gap-junction "leak" rowsum into the diagonal so elec = W_e_eff @ x.
    W_e_eff = W_e - jnp.diag(jnp.sum(W_e, axis=1))
    bias_c = jnp.asarray(bias, jnp.float32).reshape(n, 1)
    dt_tau = (dt / jnp.asarray(tau, jnp.float32)).reshape(n, 1)
    h = hidden_states.astype(jnp.float32)
    u = inp.astype(jnp.float32)

    # ---- tiling: grid over the native batch axis, (bb, n, T) blocks, no relayout ------
    cap = _vmem_capacity_bytes()
    bb = _pick_batch_block(B, n, T, n_out, budget_bytes=int(cap * 0.45))
    grid = (B // bb,)

    cores = _detect_num_cores()
    if cores > 1 and grid[0] >= 2 and grid[0] % 2 == 0:
        preferred_sem = (pltpu.CORE_PARALLEL,)     # split the grid across v7x's 2 TCs
    else:
        preferred_sem = ("parallel",)              # independent grid steps

    out_sd = jax.ShapeDtypeStruct((B, n, T), jnp.float32)
    cost = pl.CostEstimate(                        # relayout-free data movement
        flops=4 * n * n * B * T,                   # two (n,n) x (n,T) matmuls per batch
        transcendentals=0,
        bytes_accessed=((2 + n_out) * B * n * T + 2 * n * n + 2 * n) * 4,
    )

    def call(single_buffer_consts, dim_sems):
        def const_spec(shape):
            kw = ({"pipeline_mode": pl.Buffered(buffer_count=1)}
                  if single_buffer_consts else {})
            return pl.BlockSpec(shape, lambda i: (0, 0), **kw)

        blk = pl.BlockSpec((bb, n, T), lambda i: (i, 0, 0))
        return pl.pallas_call(
            _li_kernel,
            out_shape=(out_sd,) * n_out,
            grid_spec=pltpu.PrefetchScalarGridSpec(
                num_scalar_prefetch=0,
                grid=grid,
                in_specs=[blk, blk,                                  # hidden, input
                          const_spec((n, n)), const_spec((n, n)),    # W_c, W_e_eff
                          const_spec((n, 1)), const_spec((n, 1))],   # bias, dt/tau
                out_specs=(blk,) * n_out,
            ),
            compiler_params=pltpu.CompilerParams(
                dimension_semantics=dim_sems,
                vmem_limit_bytes=int(cap * 0.7),
            ),
            cost_estimate=cost,
        )(h, u, W_c, W_e_eff, bias_c, dt_tau)

    # Most aggressive config first; fall back so the kernel still runs on jax builds /
    # chips without pipeline_mode single-buffering or CORE_PARALLEL support.
    attempts = list(dict.fromkeys(
        [(True, preferred_sem), (False, preferred_sem), (False, ("parallel",))]))
    outs, last_err = None, None
    for single_buf, sems in attempts:
        try:
            outs = call(single_buf, sems)
            break
        except Exception as e:                     # pragma: no cover (version-dependent)
            last_err = e
    if outs is None:
        raise last_err

    if return_diagnostics:
        return outs                                # (mu, chem, elec)
    return outs[0]


# ---------------------------------------------------------------------------------------
# Pure-JAX reference mirroring the PyTorch module (is_Training=True path, relu).
# ---------------------------------------------------------------------------------------
def _reference(inp, hidden_states, sparsity_c, magnitudes_c, sparsity_e,
               magnitudes_e, bias, tau, dt):
    B, n, T = inp.shape
    x = jnp.concatenate(
        [jnp.zeros((B, n, 1), jnp.float32), hidden_states[:, :, :-1]], axis=2)
    W_c = sparsity_c * (magnitudes_c * 10.0)
    W_e = sparsity_e * ((magnitudes_e + magnitudes_e.T) * 0.01)
    chem = jnp.einsum('ij,bjt->bit', W_c, jnp.maximum(x, 0.0),
                      precision=jax.lax.Precision.HIGHEST)
    xt = jnp.transpose(x, (0, 2, 1))                 # (B, T, n)
    gap = xt[:, :, None, :] - xt[:, :, :, None]      # gap[b,t,i,j] = x_j - x_i
    elec = jnp.transpose(jnp.sum(W_e[None, None] * gap, axis=3), (0, 2, 1))
    dt_tau = (dt / tau)[None, :, None]
    mu = dt_tau * (chem + elec + bias[None, :, None] + inp - x) + x
    return mu, chem, elec


def _run_case(key, B, n, T, dt):
    ks = jax.random.split(key, 8)
    inp = jax.random.normal(ks[0], (B, n, T), dtype=jnp.float32)
    hidden = jax.random.normal(ks[1], (B, n, T), dtype=jnp.float32)

    # Deterministic synthetic "connectome" parameters.
    magnitudes_c = jax.random.uniform(ks[2], (n, n), minval=-0.01, maxval=0.01,
                                      dtype=jnp.float32)
    sparsity_c = (jax.random.uniform(ks[3], (n, n)) < 0.3).astype(jnp.float32)
    magnitudes_e = jax.random.uniform(ks[4], (n, n), minval=0.0, maxval=1.0,
                                      dtype=jnp.float32)
    se = (jax.random.uniform(ks[5], (n, n)) < 0.2).astype(jnp.float32)
    sparsity_e = jnp.maximum(se, se.T)               # gap junctions are symmetric
    bias = jax.random.uniform(ks[6], (n,), minval=0.01, maxval=0.02, dtype=jnp.float32)
    tau = jax.random.uniform(ks[7], (n,), minval=dt, maxval=0.2, dtype=jnp.float32)

    mu, chem, elec = leaky_integrator_current_forward(
        inp, hidden, sparsity_c, magnitudes_c, sparsity_e, magnitudes_e, bias, tau, dt)
    jax.block_until_ready((mu, chem, elec))

    mu_r, chem_r, elec_r = _reference(
        inp, hidden, sparsity_c, magnitudes_c, sparsity_e, magnitudes_e, bias, tau, dt)
    # In-kernel f32 dots on the MXU are near-f32 (multi-pass); this tolerance covers
    # last-bit differences vs the Precision.HIGHEST reference einsum.
    assert jnp.allclose(chem, chem_r, atol=5e-5), "chem_in mismatch"
    assert jnp.allclose(elec, elec_r, atol=5e-5), "elec_in mismatch"
    assert jnp.allclose(mu, mu_r, atol=5e-5), "mu mismatch"

    # mu-only path: diagnostics dropped -> 2 fewer output arrays of HBM traffic.
    mu_only = leaky_integrator_current_forward(
        inp, hidden, sparsity_c, magnitudes_c, sparsity_e, magnitudes_e, bias, tau, dt,
        return_diagnostics=False)
    jax.block_until_ready(mu_only)
    assert jnp.allclose(mu_only, mu_r, atol=5e-5), "mu (diagnostics-off) mismatch"


if __name__ == "__main__":
    key = jax.random.PRNGKey(0)
    k1, k2, k3 = jax.random.split(key, 3)
    # Small case: bb=1 batch per step, grid=(2,)  (two grid steps -> dual-TC friendly).
    _run_case(k1, B=2, n=32, T=128, dt=0.01)
    # Larger case: bb=8 batches per step, grid=(2,)  (exercises the in-kernel unroll).
    _run_case(k2, B=16, n=48, T=256, dt=0.01)
    # Odd batch count: exercises the tile picker's fallback paths (bb=1, grid=(3,)).
    _run_case(k3, B=3, n=40, T=128, dt=0.01)
    print("KERNEL_OK")
</pallas_src>

<mosaic_0001>
module attributes {stable_mosaic.version = 11 : i64} {
  func.func @_li_kernel(%arg0: i32, %arg1: memref<1x32x128xf32, #tpu.memory_space<vmem>>, %arg2: memref<1x32x128xf32, #tpu.memory_space<vmem>>, %arg3: memref<32x32xf32, #tpu.memory_space<vmem>>, %arg4: memref<32x32xf32, #tpu.memory_space<vmem>>, %arg5: memref<32x1xf32, #tpu.memory_space<vmem>>, %arg6: memref<32x1xf32, #tpu.memory_space<vmem>>, %arg7: memref<1x32x128xf32, #tpu.memory_space<vmem>>, %arg8: memref<1x32x128xf32, #tpu.memory_space<vmem>>, %arg9: memref<1x32x128xf32, #tpu.memory_space<vmem>>) attributes {dimension_semantics = [#tpu.dimension_semantics<parallel>], iteration_bounds = array<i64: 2>, scalar_prefetch = 0 : i64, scratch_operands = 0 : i64, tpu.core_type = #tpu.core_type<tc>, window_params = [{transform_indices = @transform_0, window_bounds = array<i64: 1, 32, 128>}, {transform_indices = @transform_1, window_bounds = array<i64: 1, 32, 128>}, {pipeline_mode = #tpu.pipeline_mode<synchronous>, transform_indices = @transform_2, window_bounds = array<i64: 32, 32>}, {pipeline_mode = #tpu.pipeline_mode<synchronous>, transform_indices = @transform_3, window_bounds = array<i64: 32, 32>}, {pipeline_mode = #tpu.pipeline_mode<synchronous>, transform_indices = @transform_4, window_bounds = array<i64: 32, 1>}, {pipeline_mode = #tpu.pipeline_mode<synchronous>, transform_indices = @transform_5, window_bounds = array<i64: 32, 1>}, {transform_indices = @transform_6, window_bounds = array<i64: 1, 32, 128>}, {transform_indices = @transform_7, window_bounds = array<i64: 1, 32, 128>}, {transform_indices = @transform_8, window_bounds = array<i64: 1, 32, 128>}]} {
    %c0 = arith.constant 0 : index
    %c0_0 = arith.constant 0 : index
    %0 = vector.load %arg3[%c0, %c0_0] : memref<32x32xf32, #tpu.memory_space<vmem>>, vector<32x32xf32>
    %c0_1 = arith.constant 0 : index
    %c0_2 = arith.constant 0 : index
    %1 = vector.load %arg4[%c0_1, %c0_2] : memref<32x32xf32, #tpu.memory_space<vmem>>, vector<32x32xf32>
    %c0_3 = arith.constant 0 : index
    %c0_4 = arith.constant 0 : index
    %2 = vector.load %arg5[%c0_3, %c0_4] : memref<32x1xf32, #tpu.memory_space<vmem>>, vector<32x1xf32>
    %c0_5 = arith.constant 0 : index
    %c0_6 = arith.constant 0 : index
    %3 = vector.load %arg6[%c0_5, %c0_6] : memref<32x1xf32, #tpu.memory_space<vmem>>, vector<32x1xf32>
    %4 = tpu.iota {dimensions = array<i32: 1>} : vector<1x128xi32>
    %c0_i32 = arith.constant 0 : i32
    %5 = vector.broadcast %c0_i32 : i32 to vector<1x128xi32>
    %6 = arith.cmpi eq, %4, %5 : vector<1x128xi32>
    %c0_7 = arith.constant 0 : index
    %c0_8 = arith.constant 0 : index
    %c0_9 = arith.constant 0 : index
    %7 = vector.load %arg1[%c0_7, %c0_8, %c0_9] : memref<1x32x128xf32, #tpu.memory_space<vmem>>, vector<1x32x128xf32>
    %8 = vector.shape_cast %7 : vector<1x32x128xf32> to vector<32x128xf32>
    %c1_i32 = arith.constant 1 : i32
    %9 = tpu.dynamic_rotate %8 by %c1_i32 dim 1 : vector<32x128xf32>, i32 -> vector<32x128xf32>
    %cst = arith.constant 0.000000e+00 : f32
    %10 = vector.shape_cast %6 : vector<1x128xi1> to vector<1x128xi1>
    %11 = vector.broadcast %10 : vector<1x128xi1> to vector<32x128xi1>
    %12 = vector.broadcast %cst : f32 to vector<32x128xf32>
    %13 = arith.select %11, %12, %9 : vector<32x128xi1>, vector<32x128xf32>
    %cst_10 = arith.constant 0.000000e+00 : f32
    %14 = vector.broadcast %cst_10 : f32 to vector<32x128xf32>
    %15 = arith.maximumf %13, %14 : vector<32x128xf32>
    %cst_11 = arith.constant dense<0.000000e+00> : vector<32x128xf32>
    %16 = tpu.matmul %0, %15, %cst_11 {dimension_numbers = #tpu.dot_dimension_numbers<[1], [0], [0], [1], [0, 0, 1, 1], [], []>} : vector<32x32xf32>, vector<32x128xf32>, vector<32x128xf32> -> vector<32x128xf32>
    %cst_12 = arith.constant dense<0.000000e+00> : vector<32x128xf32>
    %17 = tpu.matmul %1, %13, %cst_12 {dimension_numbers = #tpu.dot_dimension_numbers<[1], [0], [0], [1], [0, 0, 1, 1], [], []>} : vector<32x32xf32>, vector<32x128xf32>, vector<32x128xf32> -> vector<32x128xf32>
    %18 = arith.addf %16, %17 : vector<32x128xf32>
    %19 = vector.broadcast %2 : vector<32x1xf32> to vector<32x128xf32>
    %20 = arith.addf %18, %19 : vector<32x128xf32>
    %c0_13 = arith.constant 0 : index
    %c0_14 = arith.constant 0 : index
    %c0_15 = arith.constant 0 : index
    %21 = vector.load %arg2[%c0_13, %c0_14, %c0_15] : memref<1x32x128xf32, #tpu.memory_space<vmem>>, vector<1x32x128xf32>
    %22 = vector.shape_cast %21 : vector<1x32x128xf32> to vector<32x128xf32>
    %23 = arith.addf %20, %22 : vector<32x128xf32>
    %24 = arith.subf %23, %13 : vector<32x128xf32>
    %25 = vector.broadcast %3 : vector<32x1xf32> to vector<32x128xf32>
    %26 = arith.mulf %25, %24 : vector<32x128xf32>
    %27 = arith.addf %26, %13 : vector<32x128xf32>
    %c0_16 = arith.constant 0 : index
    %c0_17 = arith.constant 0 : index
    %c0_18 = arith.constant 0 : index
    %28 = vector.load %arg7[%c0_16, %c0_17, %c0_18] : memref<1x32x128xf32, #tpu.memory_space<vmem>>, vector<1x32x128xf32>
    %29 = vector.shape_cast %28 : vector<1x32x128xf32> to vector<32x128xf32>
    %30 = vector.shape_cast %27 : vector<32x128xf32> to vector<1x32x128xf32>
    tpu.vector_store %arg7[%c0_16, %c0_17, %c0_18], %30 {strides = array<i32>} : memref<1x32x128xf32, #tpu.memory_space<vmem>>, vector<1x32x128xf32>,
    %c0_19 = arith.constant 0 : index
    %c0_20 = arith.constant 0 : index
    %c0_21 = arith.constant 0 : index
    %31 = vector.load %arg8[%c0_19, %c0_20, %c0_21] : memref<1x32x128xf32, #tpu.memory_space<vmem>>, vector<1x32x128xf32>
    %32 = vector.shape_cast %31 : vector<1x32x128xf32> to vector<32x128xf32>
    %33 = vector.shape_cast %16 : vector<32x128xf32> to vector<1x32x128xf32>
    tpu.vector_store %arg8[%c0_19, %c0_20, %c0_21], %33 {strides = array<i32>} : memref<1x32x128xf32, #tpu.memory_space<vmem>>, vector<1x32x128xf32>,
    %c0_22 = arith.constant 0 : index
    %c0_23 = arith.constant 0 : index
    %c0_24 = arith.constant 0 : index
    %34 = vector.load %arg9[%c0_22, %c0_23, %c0_24] : memref<1x32x128xf32, #tpu.memory_space<vmem>>, vector<1x32x128xf32>
    %35 = vector.shape_cast %34 : vector<1x32x128xf32> to vector<32x128xf32>
    %36 = vector.shape_cast %17 : vector<32x128xf32> to vector<1x32x128xf32>
    tpu.vector_store %arg9[%c0_22, %c0_23, %c0_24], %36 {strides = array<i32>} : memref<1x32x128xf32, #tpu.memory_space<vmem>>, vector<1x32x128xf32>,
    return
  }
  func.func @transform_0(%arg0: i32) -> (i32, i32, i32) {
    %c0_i32 = arith.constant 0 : i32
    %c0_i32_0 = arith.constant 0 : i32
    %c0_i32_1 = arith.constant 0 : i32
    return %arg0, %c0_i32, %c0_i32_0 : i32, i32, i32
  }
  func.func @transform_1(%arg0: i32) -> (i32, i32, i32) {
    %c0_i32 = arith.constant 0 : i32
    %c0_i32_0 = arith.constant 0 : i32
    %c0_i32_1 = arith.constant 0 : i32
    return %arg0, %c0_i32, %c0_i32_0 : i32, i32, i32
  }
  func.func @transform_2(%arg0: i32) -> (i32, i32) {
    %c0_i32 = arith.constant 0 : i32
    %c0_i32_0 = arith.constant 0 : i32
    %c0_i32_1 = arith.constant 0 : i32
    return %c0_i32, %c0_i32_0 : i32, i32
  }
  func.func @transform_3(%arg0: i32) -> (i32, i32) {
    %c0_i32 = arith.constant 0 : i32
    %c0_i32_0 = arith.constant 0 : i32
    %c0_i32_1 = arith.constant 0 : i32
    return %c0_i32, %c0_i32_0 : i32, i32
  }
  func.func @transform_4(%arg0: i32) -> (i32, i32) {
    %c0_i32 = arith.constant 0 : i32
    %c0_i32_0 = arith.constant 0 : i32
    %c0_i32_1 = arith.constant 0 : i32
    return %c0_i32, %c0_i32_0 : i32, i32
  }
  func.func @transform_5(%arg0: i32) -> (i32, i32) {
    %c0_i32 = arith.constant 0 : i32
    %c0_i32_0 = arith.constant 0 : i32
    %c0_i32_1 = arith.constant 0 : i32
    return %c0_i32, %c0_i32_0 : i32, i32
  }
  func.func @transform_6(%arg0: i32) -> (i32, i32, i32) {
    %c0_i32 = arith.constant 0 : i32
    %c0_i32_0 = arith.constant 0 : i32
    %c0_i32_1 = arith.constant 0 : i32
    return %arg0, %c0_i32, %c0_i32_0 : i32, i32, i32
  }
  func.func @transform_7(%arg0: i32) -> (i32, i32, i32) {
    %c0_i32 = arith.constant 0 : i32
    %c0_i32_0 = arith.constant 0 : i32
    %c0_i32_1 = arith.constant 0 : i32
    return %arg0, %c0_i32, %c0_i32_0 : i32, i32, i32
  }
  func.func @transform_8(%arg0: i32) -> (i32, i32, i32) {
    %c0_i32 = arith.constant 0 : i32
    %c0_i32_0 = arith.constant 0 : i32
    %c0_i32_1 = arith.constant 0 : i32
    return %arg0, %c0_i32, %c0_i32_0 : i32, i32, i32
  }
}

module attributes {stable_mosaic.version = 11 : i64} {
  func.func @_li_kernel(%arg0: i32, %arg1: memref<1x32x128xf32, #tpu.memory_space<vmem>>, %arg2: memref<1x32x128xf32, #tpu.memory_space<vmem>>, %arg3: memref<32x32xf32, #tpu.memory_space<vmem>>, %arg4: memref<32x32xf32, #tpu.memory_space<vmem>>, %arg5: memref<32x1xf32, #tpu.memory_space<vmem>>, %arg6: memref<32x1xf32, #tpu.memory_space<vmem>>, %arg7: memref<1x32x128xf32, #tpu.memory_space<vmem>>, %arg8: memref<1x32x128xf32, #tpu.memory_space<vmem>>, %arg9: memref<1x32x128xf32, #tpu.memory_space<vmem>>) attributes {dimension_semantics = [#tpu.dimension_semantics<parallel>], iteration_bounds = array<i64: 2>, scalar_prefetch = 0 : i64, scratch_operands = 0 : i64, tpu.core_type = #tpu.core_type<tc>, window_params = [{transform_indices = @transform_0, window_bounds = array<i64: 1, 32, 128>}, {transform_indices = @transform_1, window_bounds = array<i64: 1, 32, 128>}, {pipeline_mode = #tpu.pipeline_mode<synchronous>, transform_indices = @transform_2, window_bounds = array<i64: 32, 32>}, {pipeline_mode = #tpu.pipeline_mode<synchronous>, transform_indices = @transform_3, window_bounds = array<i64: 32, 32>}, {pipeline_mode = #tpu.pipeline_mode<synchronous>, transform_indices = @transform_4, window_bounds = array<i64: 32, 1>}, {pipeline_mode = #tpu.pipeline_mode<synchronous>, transform_indices = @transform_5, window_bounds = array<i64: 32, 1>}, {transform_indices = @transform_6, window_bounds = array<i64: 1, 32, 128>}, {transform_indices = @transform_7, window_bounds = array<i64: 1, 32, 128>}, {transform_indices = @transform_8, window_bounds = array<i64: 1, 32, 128>}]} {
    %c0 = arith.constant 0 : index
    %c0_0 = arith.constant 0 : index
    %0 = vector.load %arg3[%c0, %c0_0] : memref<32x32xf32, #tpu.memory_space<vmem>>, vector<32x32xf32>
    %c0_1 = arith.constant 0 : index
    %c0_2 = arith.constant 0 : index
    %1 = vector.load %arg4[%c0_1, %c0_2] : memref<32x32xf32, #tpu.memory_space<vmem>>, vector<32x32xf32>
    %c0_3 = arith.constant 0 : index
    %c0_4 = arith.constant 0 : index
    %2 = vector.load %arg5[%c0_3, %c0_4] : memref<32x1xf32, #tpu.memory_space<vmem>>, vector<32x1xf32>
    %c0_5 = arith.constant 0 : index
    %c0_6 = arith.constant 0 : index
    %3 = vector.load %arg6[%c0_5, %c0_6] : memref<32x1xf32, #tpu.memory_space<vmem>>, vector<32x1xf32>
    %4 = tpu.iota {dimensions = array<i32: 1>} : vector<1x128xi32>
    %c0_i32 = arith.constant 0 : i32
    %5 = vector.broadcast %c0_i32 : i32 to vector<1x128xi32>
    %6 = arith.cmpi eq, %4, %5 : vector<1x128xi32>
    %c0_7 = arith.constant 0 : index
    %c0_8 = arith.constant 0 : index
    %c0_9 = arith.constant 0 : index
    %7 = vector.load %arg1[%c0_7, %c0_8, %c0_9] : memref<1x32x128xf32, #tpu.memory_space<vmem>>, vector<1x32x128xf32>
    %8 = vector.shape_cast %7 : vector<1x32x128xf32> to vector<32x128xf32>
    %c1_i32 = arith.constant 1 : i32
    %9 = tpu.dynamic_rotate %8 by %c1_i32 dim 1 : vector<32x128xf32>, i32 -> vector<32x128xf32>
    %cst = arith.constant 0.000000e+00 : f32
    %10 = vector.shape_cast %6 : vector<1x128xi1> to vector<1x128xi1>
    %11 = vector.broadcast %10 : vector<1x128xi1> to vector<32x128xi1>
    %12 = vector.broadcast %cst : f32 to vector<32x128xf32>
    %13 = arith.select %11, %12, %9 : vector<32x128xi1>, vector<32x128xf32>
    %cst_10 = arith.constant 0.000000e+00 : f32
    %14 = vector.broadcast %cst_10 : f32 to vector<32x128xf32>
    %15 = arith.maximumf %13, %14 : vector<32x128xf32>
    %cst_11 = arith.constant dense<0.000000e+00> : vector<32x128xf32>
    %16 = tpu.matmul %0, %15, %cst_11 {dimension_numbers = #tpu.dot_dimension_numbers<[1], [0], [0], [1], [0, 0, 1, 1], [], []>} : vector<32x32xf32>, vector<32x128xf32>, vector<32x128xf32> -> vector<32x128xf32>
    %cst_12 = arith.constant dense<0.000000e+00> : vector<32x128xf32>
    %17 = tpu.matmul %1, %13, %cst_12 {dimension_numbers = #tpu.dot_dimension_numbers<[1], [0], [0], [1], [0, 0, 1, 1], [], []>} : vector<32x32xf32>, vector<32x128xf32>, vector<32x128xf32> -> vector<32x128xf32>
    %18 = arith.addf %16, %17 : vector<32x128xf32>
    %19 = vector.broadcast %2 : vector<32x1xf32> to vector<32x128xf32>
    %20 = arith.addf %18, %19 : vector<32x128xf32>
    %c0_13 = arith.constant 0 : index
    %c0_14 = arith.constant 0 : index
    %c0_15 = arith.constant 0 : index
    %21 = vector.load %arg2[%c0_13, %c0_14, %c0_15] : memref<1x32x128xf32, #tpu.memory_space<vmem>>, vector<1x32x128xf32>
    %22 = vector.shape_cast %21 : vector<1x32x128xf32> to vector<32x128xf32>
    %23 = arith.addf %20, %22 : vector<32x128xf32>
    %24 = arith.subf %23, %13 : vector<32x128xf32>
    %25 = vector.broadcast %3 : vector<32x1xf32> to vector<32x128xf32>
    %26 = arith.mulf %25, %24 : vector<32x128xf32>
    %27 = arith.addf %26, %13 : vector<32x128xf32>
    %c0_16 = arith.constant 0 : index
    %c0_17 = arith.constant 0 : index
    %c0_18 = arith.constant 0 : index
    %28 = vector.load %arg7[%c0_16, %c0_17, %c0_18] : memref<1x32x128xf32, #tpu.memory_space<vmem>>, vector<1x32x128xf32>
    %29 = vector.shape_cast %28 : vector<1x32x128xf32> to vector<32x128xf32>
    %30 = vector.shape_cast %27 : vector<32x128xf32> to vector<1x32x128xf32>
    tpu.vector_store %arg7[%c0_16, %c0_17, %c0_18], %30 {strides = array<i32>} : memref<1x32x128xf32, #tpu.memory_space<vmem>>, vector<1x32x128xf32>,
    %c0_19 = arith.constant 0 : index
    %c0_20 = arith.constant 0 : index
    %c0_21 = arith.constant 0 : index
    %31 = vector.load %arg8[%c0_19, %c0_20, %c0_21] : memref<1x32x128xf32, #tpu.memory_space<vmem>>, vector<1x32x128xf32>
    %32 = vector.shape_cast %31 : vector<1x32x128xf32> to vector<32x128xf32>
    %33 = vector.shape_cast %16 : vector<32x128xf32> to vector<1x32x128xf32>
    tpu.vector_store %arg8[%c0_19, %c0_20, %c0_21], %33 {strides = array<i32>} : memref<1x32x128xf32, #tpu.memory_space<vmem>>, vector<1x32x128xf32>,
    %c0_22 = arith.constant 0 : index
    %c0_23 = arith.constant 0 : index
    %c0_24 = arith.constant 0 : index
    %34 = vector.load %arg9[%c0_22, %c0_23, %c0_24] : memref<1x32x128xf32, #tpu.memory_space<vmem>>, vector<1x32x128xf32>
    %35 = vector.shape_cast %34 : vector<1x32x128xf32> to vector<32x128xf32>
    %36 = vector.shape_cast %17 : vector<32x128xf32> to vector<1x32x128xf32>
    tpu.vector_store %arg9[%c0_22, %c0_23, %c0_24], %36 {strides = array<i32>} : memref<1x32x128xf32, #tpu.memory_space<vmem>>, vector<1x32x128xf32>,
    return
  }
  func.func @transform_0(%arg0: i32) -> (i32, i32, i32) {
    %c0_i32 = arith.constant 0 : i32
    %c0_i32_0 = arith.constant 0 : i32
    %c0_i32_1 = arith.constant 0 : i32
    return %arg0, %c0_i32, %c0_i32_0 : i32, i32, i32
  }
  func.func @transform_1(%arg0: i32) -> (i32, i32, i32) {
    %c0_i32 = arith.constant 0 : i32
    %c0_i32_0 = arith.constant 0 : i32
    %c0_i32_1 = arith.constant 0 : i32
    return %arg0, %c0_i32, %c0_i32_0 : i32, i32, i32
  }
  func.func @transform_2(%arg0: i32) -> (i32, i32) {
    %c0_i32 = arith.constant 0 : i32
    %c0_i32_0 = arith.constant 0 : i32
    %c0_i32_1 = arith.constant 0 : i32
    return %c0_i32, %c0_i32_0 : i32, i32
  }
  func.func @transform_3(%arg0: i32) -> (i32, i32) {
    %c0_i32 = arith.constant 0 : i32
    %c0_i32_0 = arith.constant 0 : i32
    %c0_i32_1 = arith.constant 0 : i32
    return %c0_i32, %c0_i32_0 : i32, i32
  }
  func.func @transform_4(%arg0: i32) -> (i32, i32) {
    %c0_i32 = arith.constant 0 : i32
    %c0_i32_0 = arith.constant 0 : i32
    %c0_i32_1 = arith.constant 0 : i32
    return %c0_i32, %c0_i32_0 : i32, i32
  }
  func.func @transform_5(%arg0: i32) -> (i32, i32) {
    %c0_i32 = arith.constant 0 : i32
    %c0_i32_0 = arith.constant 0 : i32
    %c0_i32_1 = arith.constant 0 : i32
    return %c0_i32, %c0_i32_0 : i32, i32
  }
  func.func @transform_6(%arg0: i32) -> (i32, i32, i32) {
    %c0_i32 = arith.constant 0 : i32
    %c0_i32_0 = arith.constant 0 : i32
    %c0_i32_1 = arith.constant 0 : i32
    return %arg0, %c0_i32, %c0_i32_0 : i32, i32, i32
  }
  func.func @transform_7(%arg0: i32) -> (i32, i32, i32) {
    %c0_i32 = arith.constant 0 : i32
    %c0_i32_0 = arith.constant 0 : i32
    %c0_i32_1 = arith.constant 0 : i32
    return %arg0, %c0_i32, %c0_i32_0 : i32, i32, i32
  }
  func.func @transform_8(%arg0: i32) -> (i32, i32, i32) {
    %c0_i32 = arith.constant 0 : i32
    %c0_i32_0 = arith.constant 0 : i32
    %c0_i32_1 = arith.constant 0 : i32
    return %arg0, %c0_i32, %c0_i32_0 : i32, i32, i32
  }
}

</mosaic_0001>

<llo_original>
// kernel: tpu_custom_call.1
$region0: #{tpu_custom_call.1}
  #allocation0 [shape = 'u32[]', space=smem, size = 0x4, offset = 0x4, fixed_abs, tag = 'smem constant byte address 0x4 - core index']
  #allocation1 [shape = 'u32[144,128]{1,0:T(1,128)}', space=vmem, size = 0x12000, scoped, tag = 'internal scratch']
  %s0 = inlined_call_operand.vmem [shape: f32[2,32,128], index: 0, kind: input, shape index: {}]
  %s1 = inlined_call_operand.hbm [shape: f32[2,32,128], index: 1, kind: input, shape index: {}]
  %s2 = inlined_call_operand.hbm [shape: f32[32,32], index: 2, kind: input, shape index: {}]
  %s3 = inlined_call_operand.hbm [shape: f32[32,32], index: 3, kind: input, shape index: {}]
  %s4 = inlined_call_operand.vmem [shape: f32[32,1], index: 4, kind: input, shape index: {}]
  %s5 = inlined_call_operand.vmem [shape: f32[32,1], index: 5, kind: input, shape index: {}]
  %s6 = inlined_call_operand.hbm [shape: f32[2,32,128], index: 6, kind: output, shape index: {0}]
  %s7 = inlined_call_operand.hbm [shape: f32[2,32,128], index: 7, kind: output, shape index: {1}]
  %s8 = inlined_call_operand.hbm [shape: f32[2,32,128], index: 8, kind: output, shape index: {2}]
  %9 = xla_tuple %s6, %s7, %s8
  %s10 = sld [smem:[#allocation0]]
  $region85: #{tpu_custom_call.1} parent=0
    _
  %s12 = ssub.s32 1, %s10
  %s13 = scalar_select 0, %s12, %s10
  $region1: #{tpu_custom_call.1} parent=0
    #allocation2 [shape = 'u8[32768]{0}', space=vmem, size = 0x8000, scoped, tag = 'input window, operand 1']
    #allocation3 [shape = 's32[2]{0}', space=sflag, size = 0x8, scoped, tag = 'scoped memory for tpu_custom_call.1']
    #allocation4 [shape = 's32[2]{0}', space=sflag, size = 0x8, scoped, tag = 'scoped memory for tpu_custom_call.1']
    #allocation5 [shape = 'u8[16384]{0}', space=vmem, size = 0x4000, scoped, tag = 'input window, operand 2, single buffered']
    #allocation6 [shape = 's32[1]{0}', space=sflag, size = 0x4, scoped, tag = 'scoped memory for tpu_custom_call.1']
    #allocation7 [shape = 'u8[16384]{0}', space=vmem, size = 0x4000, scoped, tag = 'input window, operand 3, single buffered']
    #allocation8 [shape = 'u8[32768]{0}', space=vmem, size = 0x8000, scoped, tag = 'output window, operand 0']
    #allocation9 [shape = 'u8[32768]{0}', space=vmem, size = 0x8000, scoped, tag = 'output window, operand 1']
    #allocation10 [shape = 's32[2]{0}', space=sflag, size = 0x8, scoped, tag = 'scoped memory for tpu_custom_call.1']
    #allocation11 [shape = 'u8[32768]{0}', space=vmem, size = 0x8000, scoped, tag = 'output window, operand 2']
    %14 = vsyncpa [#allocation3], 0
    %s15 = scalar_lea.sflag [#allocation3], 1
    %16 = vsyncpa %s15, 0
    %17 = vsyncpa [#allocation6], 0
    %18 = vsyncpa [#allocation4], 0
    %s19 = scalar_lea.sflag [#allocation4], 1
    %20 = vsyncpa %s19, 0
    %21 = vsyncpa [#allocation10], 0
    %s22 = scalar_lea.sflag [#allocation10], 1
    %23 = vsyncpa %s22, 0
    loop: start=0, step=1, limit=4
    $region2: #{tpu_custom_call.1} parent=1 // loop_pre_header
      _
    $region3: #{tpu_custom_call.1} parent=1 // loop_header
      %s25 = sphi 0, %s29
      %p26 = scmp.ge.s32.totalorder %s25, 4
      %s35 = sphi 0, %s37
      %s38 = sphi 0, %s35
      %s39 = sphi 0, %s38
      %s55 = sphi 0, %s39
      %s61 = sphi 0, %s63
      %s64 = sphi 0, %s61
      %s65 = sphi 0, %s64
      %s81 = sphi 0, %s65
      %s85 = sphi 0, %s85
      %s87 = sphi 0, %s85
      %s88 = sphi 0, %s87
      %s102 = sphi 0, %s88
      %s106 = sphi 0, %s106
      %s108 = sphi 0, %s106
      %s109 = sphi 0, %s108
      %s123 = sphi 0, %s109
      %s127 = sphi 0, %s127
      %s129 = sphi 0, %s127
      %s130 = sphi 0, %s129
      %s144 = sphi 0, %s130
      %s148 = sphi 0, %s148
      %s150 = sphi 0, %s148
      %s151 = sphi 0, %s150
      %s165 = sphi 0, %s151
      %s171 = sphi 0, %s173
      %s174 = sphi 0, %s171
      %s175 = sphi 0, %s174
      %s191 = sphi 0, %s175
      %s197 = sphi 0, %s199
      %s200 = sphi 0, %s197
      %s201 = sphi 0, %s200
      %s217 = sphi 0, %s201
      %s223 = sphi 0, %s225
      %s226 = sphi 0, %s223
      %s227 = sphi 0, %s226
      %s243 = sphi 0, %s227
    $region4: #{tpu_custom_call.1} parent=1 // loop_header_branch
      %28 = sbr.rel (%p26) target = $region8
    $region5: #{tpu_custom_call.1} parent=1 // loop_body
      %s30 = ssub.s32 %s25, 1
      %s31 = ssub.s32 %s25, 2
      %s32 = sadd.s32 %s25, 1
      %s33 = ssub.s32 %s25, %s32
      %p34 = scmp.eq.s32.totalorder %s33, 0
      %s36 = sadd.s32 %s35, 1
      %s37 = scalar_select %p34, %s35, %s36
      %p40 = pneg %p34
      %p41 = scmp.eq.s32.totalorder %s25, 1
      %p42 = por %p40, %p41
      %p43 = scmp.ne.s32.totalorder %s35, %s38
      %p44 = scmp.eq.s32.totalorder %s25, 0
      %p45 = por %p43, %p44
      %p46 = scmp.ne.s32.totalorder %s35, %s38
      %p47 = scmp.eq.s32.totalorder %s30, 1
      %p48 = por %p46, %p47
      %p49 = scmp.ne.s32.totalorder %s38, %s39
      %p50 = scmp.eq.s32.totalorder %s30, 0
      %p51 = por %p49, %p50
      %p52 = scmp.ne.s32.totalorder %s38, %s39
      %p53 = scmp.eq.s32.totalorder %s31, 1
      %p54 = por %p52, %p53
      %p56 = scmp.ne.s32.totalorder %s39, %s55
      %p57 = scmp.eq.s32.totalorder %s31, 0
      %p58 = por %p56, %p57
      %s59 = ssub.s32 %s25, %s32
      %p60 = scmp.eq.s32.totalorder %s59, 0
      %s62 = sadd.s32 %s61, 1
      %s63 = scalar_select %p60, %s61, %s62
      %p66 = pneg %p60
      %p67 = scmp.eq.s32.totalorder %s25, 1
      %p68 = por %p66, %p67
      %p69 = scmp.ne.s32.totalorder %s61, %s64
      %p70 = scmp.eq.s32.totalorder %s25, 0
      %p71 = por %p69, %p70
      %p72 = scmp.ne.s32.totalorder %s61, %s64
      %p73 = scmp.eq.s32.totalorder %s30, 1
      %p74 = por %p72, %p73
      %p75 = scmp.ne.s32.totalorder %s64, %s65
      %p76 = scmp.eq.s32.totalorder %s30, 0
      %p77 = por %p75, %p76
      %p78 = scmp.ne.s32.totalorder %s64, %s65
      %p79 = scmp.eq.s32.totalorder %s31, 1
      %p80 = por %p78, %p79
      %p82 = scmp.ne.s32.totalorder %s65, %s81
      %p83 = scmp.eq.s32.totalorder %s31, 0
      %p84 = por %p82, %p83
      %s86 = sadd.s32 %s85, 1
      %p89 = scmp.eq.s32.totalorder %s25, 1
      %p90 = scmp.ne.s32.totalorder %s85, %s87
      %p91 = scmp.eq.s32.totalorder %s25, 0
      %p92 = por %p90, %p91
      %p93 = scmp.ne.s32.totalorder %s85, %s87
      %p94 = scmp.eq.s32.totalorder %s30, 1
      %p95 = por %p93, %p94
      %p96 = scmp.ne.s32.totalorder %s87, %s88
      %p97 = scmp.eq.s32.totalorder %s30, 0
      %p98 = por %p96, %p97
      %p99 = scmp.ne.s32.totalorder %s87, %s88
      %p100 = scmp.eq.s32.totalorder %s31, 1
      %p101 = por %p99, %p100
      %p103 = scmp.ne.s32.totalorder %s88, %s102
      %p104 = scmp.eq.s32.totalorder %s31, 0
      %p105 = por %p103, %p104
      %s107 = sadd.s32 %s106, 1
      %p110 = scmp.eq.s32.totalorder %s25, 1
      %p111 = scmp.ne.s32.totalorder %s106, %s108
      %p112 = scmp.eq.s32.totalorder %s25, 0
      %p113 = por %p111, %p112
      %p114 = scmp.ne.s32.totalorder %s106, %s108
      %p115 = scmp.eq.s32.totalorder %s30, 1
      %p116 = por %p114, %p115
      %p117 = scmp.ne.s32.totalorder %s108, %s109
      %p118 = scmp.eq.s32.totalorder %s30, 0
      %p119 = por %p117, %p118
      %p120 = scmp.ne.s32.totalorder %s108, %s109
      %p121 = scmp.eq.s32.totalorder %s31, 1
      %p122 = por %p120, %p121
      %p124 = scmp.ne.s32.totalorder %s109, %s123
      %p125 = scmp.eq.s32.totalorder %s31, 0
      %p126 = por %p124, %p125
      %s128 = sadd.s32 %s127, 1
      %p131 = scmp.eq.s32.totalorder %s25, 1
      %p132 = scmp.ne.s32.totalorder %s127, %s129
      %p133 = scmp.eq.s32.totalorder %s25, 0
      %p134 = por %p132, %p133
      %p135 = scmp.ne.s32.totalorder %s127, %s129
      %p136 = scmp.eq.s32.totalorder %s30, 1
      %p137 = por %p135, %p136
      %p138 = scmp.ne.s32.totalorder %s129, %s130
      %p139 = scmp.eq.s32.totalorder %s30, 0
      %p140 = por %p138, %p139
      %p141 = scmp.ne.s32.totalorder %s129, %s130
      %p142 = scmp.eq.s32.totalorder %s31, 1
      %p143 = por %p141, %p142
      %p145 = scmp.ne.s32.totalorder %s130, %s144
      %p146 = scmp.eq.s32.totalorder %s31, 0
      %p147 = por %p145, %p146
      %s149 = sadd.s32 %s148, 1
      %p152 = scmp.eq.s32.totalorder %s25, 1
      %p153 = scmp.ne.s32.totalorder %s148, %s150
      %p154 = scmp.eq.s32.totalorder %s25, 0
      %p155 = por %p153, %p154
      %p156 = scmp.ne.s32.totalorder %s148, %s150
      %p157 = scmp.eq.s32.totalorder %s30, 1
      %p158 = por %p156, %p157
      %p159 = scmp.ne.s32.totalorder %s150, %s151
      %p160 = scmp.eq.s32.totalorder %s30, 0
      %p161 = por %p159, %p160
      %p162 = scmp.ne.s32.totalorder %s150, %s151
      %p163 = scmp.eq.s32.totalorder %s31, 1
      %p164 = por %p162, %p163
      %p166 = scmp.ne.s32.totalorder %s151, %s165
      %p167 = scmp.eq.s32.totalorder %s31, 0
      %p168 = por %p166, %p167
      %s169 = ssub.s32 %s25, %s32
      %p170 = scmp.eq.s32.totalorder %s169, 0
      %s172 = sadd.s32 %s171, 1
      %s173 = scalar_select %p170, %s171, %s172
      %p176 = pneg %p170
      %p177 = scmp.eq.s32.totalorder %s25, 1
      %p178 = por %p176, %p177
      %p179 = scmp.ne.s32.totalorder %s171, %s174
      %p180 = scmp.eq.s32.totalorder %s25, 0
      %p181 = por %p179, %p180
      %p182 = scmp.ne.s32.totalorder %s171, %s174
      %p183 = scmp.eq.s32.totalorder %s30, 1
      %p184 = por %p182, %p183
      %p185 = scmp.ne.s32.totalorder %s174, %s175
      %p186 = scmp.eq.s32.totalorder %s30, 0
      %p187 = por %p185, %p186
      %p188 = scmp.ne.s32.totalorder %s174, %s175
      %p189 = scmp.eq.s32.totalorder %s31, 1
      %p190 = por %p188, %p189
      %p192 = scmp.ne.s32.totalorder %s175, %s191
      %p193 = scmp.eq.s32.totalorder %s31, 0
      %p194 = por %p192, %p193
      %s195 = ssub.s32 %s25, %s32
      %p196 = scmp.eq.s32.totalorder %s195, 0
      %s198 = sadd.s32 %s197, 1
      %s199 = scalar_select %p196, %s197, %s198
      %p202 = pneg %p196
      %p203 = scmp.eq.s32.totalorder %s25, 1
      %p204 = por %p202, %p203
      %p205 = scmp.ne.s32.totalorder %s197, %s200
      %p206 = scmp.eq.s32.totalorder %s25, 0
      %p207 = por %p205, %p206
      %p208 = scmp.ne.s32.totalorder %s197, %s200
      %p209 = scmp.eq.s32.totalorder %s30, 1
      %p210 = por %p208, %p209
      %p211 = scmp.ne.s32.totalorder %s200, %s201
      %p212 = scmp.eq.s32.totalorder %s30, 0
      %p213 = por %p211, %p212
      %p214 = scmp.ne.s32.totalorder %s200, %s201
      %p215 = scmp.eq.s32.totalorder %s31, 1
      %p216 = por %p214, %p215
      %p218 = scmp.ne.s32.totalorder %s201, %s217
      %p219 = scmp.eq.s32.totalorder %s31, 0
      %p220 = por %p218, %p219
      %s221 = ssub.s32 %s25, %s32
      %p222 = scmp.eq.s32.totalorder %s221, 0
      %s224 = sadd.s32 %s223, 1
      %s225 = scalar_select %p222, %s223, %s224
      %p228 = pneg %p222
      %p229 = scmp.eq.s32.totalorder %s25, 1
      %p230 = por %p228, %p229
      %p231 = scmp.ne.s32.totalorder %s223, %s226
      %p232 = scmp.eq.s32.totalorder %s25, 0
      %p233 = por %p231, %p232
      %p234 = scmp.ne.s32.totalorder %s223, %s226
      %p235 = scmp.eq.s32.totalorder %s30, 1
      %p236 = por %p234, %p235
      %p237 = scmp.ne.s32.totalorder %s226, %s227
      %p238 = scmp.eq.s32.totalorder %s30, 0
      %p239 = por %p237, %p238
      %p240 = scmp.ne.s32.totalorder %s226, %s227
      %p241 = scmp.eq.s32.totalorder %s31, 1
      %p242 = por %p240, %p241
      %p244 = scmp.ne.s32.totalorder %s227, %s243
      %p245 = scmp.eq.s32.totalorder %s31, 0
      %p246 = por %p244, %p245
      %p247 = scmp.le.s32.totalorder 1, %s25
      %p248 = scmp.lt.s32.totalorder %s25, 3
      %p249 = pnand %p247, %p248
      %p250 = pneg %p249
      // Predicated region
      $region9: #{tpu_custom_call.1} parent=5 // pred_check
        _
      $region10: #{tpu_custom_call.1} parent=5 // pred_check_branch
        %252 = sbr.rel (%p249) target = $region12
      $region11: #{tpu_custom_call.1} parent=5 // pred_region
        %s253 = ssub.s32 %s25, 1
        // Predicated region
        $region13: #{tpu_custom_call.1} parent=11 // pred_check
          %p254 = pneg %p98
        $region14: #{tpu_custom_call.1} parent=11 // pred_check_branch
          %256 = sbr.rel (%p254) target = $region16
        $region15: #{tpu_custom_call.1} parent=11 // pred_region
          %s258 = ssub.s32 512, 512
          %259 = vsyncadd [#allocation6], %s258
          %s260 = sshll.u32 [#allocation5], 4
          %s261 = int_to_ptr.vmem [resolvable:$true] %s260
          %266 = dma.hbm_to_vmem [thread:$0]  %s2, 512, %s261, [#allocation6], 128, 128, 8
        $region16: #{tpu_custom_call.1} parent=11 // pred_fallthru
          _
        // Predicated region
        $region17: #{tpu_custom_call.1} parent=11 // pred_check
          %p267 = pneg %p119
        $region18: #{tpu_custom_call.1} parent=11 // pred_check_branch
          %269 = sbr.rel (%p267) target = $region20
        $region19: #{tpu_custom_call.1} parent=11 // pred_region
          %s271 = ssub.s32 512, 512
          %272 = vsyncadd [#allocation6], %s271
          %s273 = sshll.u32 [#allocation7], 4
          %s274 = int_to_ptr.vmem [resolvable:$true] %s273
          %279 = dma.hbm_to_vmem [thread:$0]  %s3, 512, %s274, [#allocation6], 128, 128, 8
        $region20: #{tpu_custom_call.1} parent=11 // pred_fallthru
          _
        // Predicated region
        $region21: #{tpu_custom_call.1} parent=11 // pred_check
          %p280 = pneg %p140
        $region22: #{tpu_custom_call.1} parent=11 // pred_check_branch
          %282 = sbr.rel (%p280) target = $region24
        $region23: #{tpu_custom_call.1} parent=11 // pred_region
          _
        $region24: #{tpu_custom_call.1} parent=11 // pred_fallthru
          _
        // Predicated region
        $region25: #{tpu_custom_call.1} parent=11 // pred_check
          %p283 = pneg %p161
        $region26: #{tpu_custom_call.1} parent=11 // pred_check_branch
          %285 = sbr.rel (%p283) target = $region28
        $region27: #{tpu_custom_call.1} parent=11 // pred_region
          _
        $region28: #{tpu_custom_call.1} parent=11 // pred_fallthru
          _
      $region12: #{tpu_custom_call.1} parent=5 // pred_fallthru
        _
      %p286 = scmp.lt.s32.totalorder %s25, 2
      // Predicated region
      $region29: #{tpu_custom_call.1} parent=5 // pred_check
        %p287 = pneg %p286
      $region30: #{tpu_custom_call.1} parent=5 // pred_check_branch
        %289 = sbr.rel (%p287) target = $region32
      $region31: #{tpu_custom_call.1} parent=5 // pred_region
        // Predicated region
        $region33: #{tpu_custom_call.1} parent=31 // pred_check
          %p290 = pneg %p45
        $region34: #{tpu_custom_call.1} parent=31 // pred_check_branch
          %292 = sbr.rel (%p290) target = $region36
        $region35: #{tpu_custom_call.1} parent=31 // pred_region
          %p293 = scmp.lt.s32.totalorder %s25, 1
          %s294 = scalar_select %p293, %s25, 1
          %s295 = smul.addr %s294, 4
          %s296 = smul.addr %s295, 8
          %s297 = scalar_lea.vmem %s0, %s296
        $region36: #{tpu_custom_call.1} parent=31 // pred_fallthru
          _
        // Predicated region
        $region37: #{tpu_custom_call.1} parent=31 // pred_check
          %p298 = pneg %p71
        $region38: #{tpu_custom_call.1} parent=31 // pred_check_branch
          %300 = sbr.rel (%p298) target = $region40
        $region39: #{tpu_custom_call.1} parent=31 // pred_region
          %s301 = sand.u32 %s61, 1
          %s302 = scalar_lea.sflag [#allocation3], %s301
          %s303 = sand.u32 %s61, 1
          %s304 = smul.addr %s303, 32
          %s305 = scalar_lea.vmem [#allocation2], %s304
          %s307 = ssub.s32 512, 512
          %308 = vsyncadd %s302, %s307
          %s309 = smul.addr %s25, 4
          %s310 = smul.addr %s309, 128
          %s311 = scalar_lea.hbm %s1, %s310
          %s312 = sshll.u32 %s305, 4
          %s313 = int_to_ptr.vmem [resolvable:$true] %s312
          %318 = dma.hbm_to_vmem [thread:$0]  %s311, 512, %s313, %s302, 128, 128, 8
        $region40: #{tpu_custom_call.1} parent=31 // pred_fallthru
          _
      $region32: #{tpu_custom_call.1} parent=5 // pred_fallthru
        _
      %p319 = scmp.le.s32.totalorder 1, %s25
      %p320 = scmp.lt.s32.totalorder %s25, 3
      %p321 = pnand %p319, %p320
      %p322 = pneg %p321
      // Predicated region
      $region41: #{tpu_custom_call.1} parent=5 // pred_check
        _
      $region42: #{tpu_custom_call.1} parent=5 // pred_check_branch
        %324 = sbr.rel (%p321) target = $region44
      $region43: #{tpu_custom_call.1} parent=5 // pred_region
        %s325 = ssub.s32 %s25, 1
        %s326 = sand.u32 %s64, 1
        %s327 = scalar_lea.sflag [#allocation3], %s326
        %s328 = sand.u32 %s64, 1
        %s329 = smul.addr %s328, 32
        %s330 = scalar_lea.vmem [#allocation2], %s329
        // Predicated region
        $region45: #{tpu_custom_call.1} parent=43 // pred_check
          %p331 = pneg %p77
        $region46: #{tpu_custom_call.1} parent=43 // pred_check_branch
          %333 = sbr.rel (%p331) target = $region48
        $region47: #{tpu_custom_call.1} parent=43 // pred_region
          %334 = dma.done %s327, 512
        $region48: #{tpu_custom_call.1} parent=43 // pred_fallthru
          _
        // Predicated region
        $region49: #{tpu_custom_call.1} parent=43 // pred_check
          %p335 = pneg %p98
        $region50: #{tpu_custom_call.1} parent=43 // pred_check_branch
          %337 = sbr.rel (%p335) target = $region52
        $region51: #{tpu_custom_call.1} parent=43 // pred_region
          %338 = dma.done [#allocation6], 512
        $region52: #{tpu_custom_call.1} parent=43 // pred_fallthru
          _
        // Predicated region
        $region53: #{tpu_custom_call.1} parent=43 // pred_check
          %p339 = pneg %p119
        $region54: #{tpu_custom_call.1} parent=43 // pred_check_branch
          %341 = sbr.rel (%p339) target = $region56
        $region55: #{tpu_custom_call.1} parent=43 // pred_region
          %342 = dma.done [#allocation6], 512
        $region56: #{tpu_custom_call.1} parent=43 // pred_fallthru
          _
        %p343 = scmp.lt.s32.totalorder %s30, 1
        %s344 = scalar_select %p343, %s30, 1
        %s345 = smul.addr %s344, 4
        %s346 = smul.addr %s345, 8
        %s347 = scalar_lea.vmem %s0, %s346
        %p348 = pneg %p51
        %p349 = pneg %p48
        %s350 = sand.u32 %s64, 1
        %s351 = scalar_lea.sflag [#allocation3], %s350
        %s352 = sand.u32 %s64, 1
        %s353 = smul.addr %s352, 32
        %s354 = scalar_lea.vmem [#allocation2], %s353
        %p355 = pneg %p77
        %p356 = pneg %p74
        %p357 = pneg %p98
        %p358 = pneg %p95
        %p359 = pneg %p119
        %p360 = pneg %p116
        %p361 = pneg %p140
        %p362 = pneg %p137
        %p363 = pneg %p161
        %p364 = pneg %p158
        %p365 = pneg %p187
        %p366 = pneg %p184
        %s367 = sand.u32 %s174, 1
        %s368 = scalar_lea.sflag [#allocation4], %s367
        %s369 = sand.u32 %s174, 1
        %s370 = smul.addr %s369, 32
        %s371 = scalar_lea.vmem [#allocation8], %s370
        %p372 = pneg %p213
        %p373 = pneg %p210
        %s374 = sand.u32 %s30, 1
        %s375 = scalar_lea.sflag [#allocation10], %s374
        %s376 = sand.u32 %s200, 1
        %s377 = smul.addr %s376, 32
        %s378 = scalar_lea.vmem [#allocation9], %s377
        %p379 = pneg %p239
        %p380 = pneg %p236
        %s381 = sand.u32 %s30, 1
        %s382 = scalar_lea.sflag [#allocation10], %s381
        %s383 = sand.u32 %s226, 1
        %s384 = smul.addr %s383, 32
        %s385 = scalar_lea.vmem [#allocation11], %s384
        %p386 = scmp.lt.s32.totalorder %s30, 1
        %s387 = scalar_select %p386, %s30, 1
        %s388 = smul.addr %s387, 4
        %s389 = smul.addr %s388, 8
        %s390 = scalar_lea.vmem %s0, %s389
        %v391 = vld [vmem:[#allocation5] sm:$0xff]
        %v392 = vld [vmem:[#allocation5 + $0x8] sm:$0xff]
        %v393 = vld [vmem:[#allocation5 + $0x10] sm:$0xff]
        %v394 = vld [vmem:[#allocation5 + $0x18] sm:$0xff]
        %v395 = vld [vmem:[#allocation7] sm:$0xff]
        %v396 = vld [vmem:[#allocation7 + $0x8] sm:$0xff]
        %v397 = vld [vmem:[#allocation7 + $0x10] sm:$0xff]
        %v398 = vld [vmem:[#allocation7 + $0x18] sm:$0xff]
        %v399 = vld [vmem:[%s4] sm:$0xff]
        %v400 = vld [vmem:[%s4 + $0x8] sm:$0xff]
        %v401 = vld [vmem:[%s4 + $0x10] sm:$0xff]
        %v402 = vld [vmem:[%s4 + $0x18] sm:$0xff]
        %v403 = vld [vmem:[%s5] sm:$0xff]
        %v404 = vld [vmem:[%s5 + $0x8] sm:$0xff]
        %v405 = vld [vmem:[%s5 + $0x10] sm:$0xff]
        %v406 = vld [vmem:[%s5 + $0x18] sm:$0xff]
        %v407 = vlaneseq
        %v408 = vand.u32 %v407, 127
        %vm409 = vcmp.eq.s32.totalorder %v408, 0
        %v410 = vld [vmem:[%s390] sm:$0xff]
        %v411 = vld [vmem:[%s390 + $0x8] sm:$0xff]
        %v412 = vld [vmem:[%s390 + $0x10] sm:$0xff]
        %v413 = vld [vmem:[%s390 + $0x18] sm:$0xff]
        %414 = vrot.lane.b32.xlu0 %v410, 1
        %v415 = vpop.permute.xlu0 %414
        %416 = vrot.lane.b32.xlu0 %v411, 1
        %v417 = vpop.permute.xlu0 %416
        %418 = vrot.lane.b32.xlu0 %v412, 1
        %v419 = vpop.permute.xlu0 %418
        %420 = vrot.lane.b32.xlu0 %v413, 1
        %v421 = vpop.permute.xlu0 %420
        %v422 = vsel %vm409, 1, 0
        %vm423 = vcmp.eq.s32.totalorder %v422, 1
        %v424 = vsel %vm423, 0.0, %v415
        %v425 = vsel %vm423, 0.0, %v417
        %v426 = vsel %vm423, 0.0, %v419
        %v427 = vsel %vm423, 0.0, %v421
        %v428 = vmax.f32 %v424, 0.0
        %v429 = vmax.f32 %v425, 0.0
        %v430 = vmax.f32 %v426, 0.0
        %v431 = vmax.f32 %v427, 0.0
        %vm432 = vcmask 261120
        %v434 = vsel %vm432, %v391, 0
        %v437 = vsel %vm432, %v392, 0
        %v440 = vsel %vm432, %v393, 0
        %v443 = vsel %vm432, %v394, 0
        %445 = vmatprep.subr.mxu0 0.0
        %446 = vmatpush1.msra.mxu0 %v428
        %447 = vmatprep.subr.mxu0 0.0
        %448 = vmatpush1.msra.mxu0 %v429
        %449 = vmatprep.subr.mxu0 0.0
        %450 = vmatpush1.msra.mxu0 %v430
        %451 = vmatprep.subr.mxu0 0.0
        %452 = vmatpush1.msra.mxu0 %v431
        %453 = vmatprep.subr.mxu0 0.0
        %454 = vmatpush1.msra.mxu0 0.0
        %455 = vmatprep.subr.mxu0 0.0
        %456 = vmatpush1.msra.mxu0 0.0
        %457 = vmatprep.subr.mxu0 0.0
        %458 = vmatpush1.msra.mxu0 0.0
        %459 = vmatprep.subr.mxu0 0.0
        %460 = vmatpush1.msra.mxu0 0.0
        %461 = vmatprep.subr.mxu0 0.0
        %462 = vmatpush1.msra.mxu0 0.0
        %463 = vmatprep.subr.mxu0 0.0
        %464 = vmatpush1.msra.mxu0 0.0
        %465 = vmatprep.subr.mxu0 0.0
        %466 = vmatpush1.msra.mxu0 0.0
        %467 = vmatprep.subr.mxu0 0.0
        %468 = vmatpush1.msra.mxu0 0.0
        %469 = vmatprep.subr.mxu0 0.0
        %470 = vmatpush1.msra.mxu0 0.0
        %471 = vmatprep.subr.mxu0 0.0
        %472 = vmatpush1.msra.mxu0 0.0
        %473 = vmatprep.subr.mxu0 0.0
        %474 = vmatpush1.msra.mxu0 0.0
        %475 = vmatprep.subr.mxu0 0.0
        %476 = vmatpush1.msra.mxu0 0.0
        %477 = vmatprep.subr.mxu0 0.0
        %478 = vmatpush1.msra.mxu0 0.0
        %479 = vmatprep.subr.mxu0 0.0
        %480 = vmatpush1.msra.mxu0 0.0
        %481 = vmatprep.subr.mxu0 0.0
        %482 = vmatpush1.msra.mxu0 0.0
        %483 = vmatprep.subr.mxu0 0.0
        %484 = vmatpush1.msra.mxu0 0.0
        %485 = vmatprep.subr.mxu0 0.0
        %486 = vmatpush1.msra.mxu0 0.0
        %487 = vmatprep.subr.mxu0 0.0
        %488 = vmatpush1.msra.mxu0 0.0
        %489 = vmatprep.subr.mxu0 0.0
        %490 = vmatpush1.msra.mxu0 0.0
        %491 = vmatprep.subr.mxu0 0.0
        %492 = vmatpush1.msra.mxu0 0.0
        %493 = vmatprep.subr.mxu0 0.0
        %494 = vmatpush1.msra.mxu0 0.0
        %495 = vmatprep.subr.mxu0 0.0
        %496 = vmatpush1.msra.mxu0 0.0
        %497 = vmatprep.subr.mxu0 0.0
        %498 = vmatpush1.msra.mxu0 0.0
        %499 = vmatprep.subr.mxu0 0.0
        %500 = vmatpush1.msra.mxu0 0.0
        %501 = vmatprep.subr.mxu0 0.0
        %502 = vmatpush1.msra.mxu0 0.0
        %503 = vmatprep.subr.mxu0 0.0
        %504 = vmatpush1.msra.mxu0 0.0
        %505 = vmatprep.subr.mxu0 0.0
        %506 = vmatpush1.msra.mxu0 0.0
        %507 = vmatprep.subr.mxu0 0.0
        %508 = vmatpush1.msra.mxu0 0.0
        %509 = vmatprep.mubr.f32.mxu0 0.0
        %510 = vmatmul.mubr.f32.gmra.mrb[0].mxu0 %v434
        %v511 = vpop.f32.mrb[0].mxu0
        %v512 = vadd.f32 0.0, %v511
        %v513 = vpop.f32.mrb[0].mxu0
        %514 = vmatprep.mubr.f32.mxu0 0.0
        %515 = vmatmul.mubr.f32.gmra.mrb[0].mxu0 %v437
        %v516 = vpop.f32.mrb[0].mxu0
        %v517 = vadd.f32 0.0, %v516
        %v518 = vpop.f32.mrb[0].mxu0
        %519 = vmatprep.mubr.f32.mxu0 0.0
        %520 = vmatmul.mubr.f32.gmra.mrb[0].mxu0 %v440
        %v521 = vpop.f32.mrb[0].mxu0
        %v522 = vadd.f32 0.0, %v521
        %v523 = vpop.f32.mrb[0].mxu0
        %524 = vmatprep.mubr.f32.mxu0 0.0
        %525 = vmatmul.mubr.f32.gmra.mrb[0].mxu0 %v443
        %v526 = vpop.f32.mrb[0].mxu0
        %v527 = vadd.f32 0.0, %v526
        %v528 = vpop.f32.mrb[0].mxu0
        %529 = vdwg.mxu0
        %v531 = vsel %vm432, %v395, 0
        %v534 = vsel %vm432, %v396, 0
        %v537 = vsel %vm432, %v397, 0
        %v540 = vsel %vm432, %v398, 0
        %542 = vmatprep.subr.mxu0 0.0
        %543 = vmatpush1.msra.mxu0 %v424
        %544 = vmatprep.subr.mxu0 0.0
        %545 = vmatpush1.msra.mxu0 %v425
        %546 = vmatprep.subr.mxu0 0.0
        %547 = vmatpush1.msra.mxu0 %v426
        %548 = vmatprep.subr.mxu0 0.0
        %549 = vmatpush1.msra.mxu0 %v427
        %550 = vmatprep.subr.mxu0 0.0
        %551 = vmatpush1.msra.mxu0 0.0
        %552 = vmatprep.subr.mxu0 0.0
        %553 = vmatpush1.msra.mxu0 0.0
        %554 = vmatprep.subr.mxu0 0.0
        %555 = vmatpush1.msra.mxu0 0.0
        %556 = vmatprep.subr.mxu0 0.0
        %557 = vmatpush1.msra.mxu0 0.0
        %558 = vmatprep.subr.mxu0 0.0
        %559 = vmatpush1.msra.mxu0 0.0
        %560 = vmatprep.subr.mxu0 0.0
        %561 = vmatpush1.msra.mxu0 0.0
        %562 = vmatprep.subr.mxu0 0.0
        %563 = vmatpush1.msra.mxu0 0.0
        %564 = vmatprep.subr.mxu0 0.0
        %565 = vmatpush1.msra.mxu0 0.0
        %566 = vmatprep.subr.mxu0 0.0
        %567 = vmatpush1.msra.mxu0 0.0
        %568 = vmatprep.subr.mxu0 0.0
        %569 = vmatpush1.msra.mxu0 0.0
        %570 = vmatprep.subr.mxu0 0.0
        %571 = vmatpush1.msra.mxu0 0.0
        %572 = vmatprep.subr.mxu0 0.0
        %573 = vmatpush1.msra.mxu0 0.0
        %574 = vmatprep.subr.mxu0 0.0
        %575 = vmatpush1.msra.mxu0 0.0
        %576 = vmatprep.subr.mxu0 0.0
        %577 = vmatpush1.msra.mxu0 0.0
        %578 = vmatprep.subr.mxu0 0.0
        %579 = vmatpush1.msra.mxu0 0.0
        %580 = vmatprep.subr.mxu0 0.0
        %581 = vmatpush1.msra.mxu0 0.0
        %582 = vmatprep.subr.mxu0 0.0
        %583 = vmatpush1.msra.mxu0 0.0
        %584 = vmatprep.subr.mxu0 0.0
        %585 = vmatpush1.msra.mxu0 0.0
        %586 = vmatprep.subr.mxu0 0.0
        %587 = vmatpush1.msra.mxu0 0.0
        %588 = vmatprep.subr.mxu0 0.0
        %589 = vmatpush1.msra.mxu0 0.0
        %590 = vmatprep.subr.mxu0 0.0
        %591 = vmatpush1.msra.mxu0 0.0
        %592 = vmatprep.subr.mxu0 0.0
        %593 = vmatpush1.msra.mxu0 0.0
        %594 = vmatprep.subr.mxu0 0.0
        %595 = vmatpush1.msra.mxu0 0.0
        %596 = vmatprep.subr.mxu0 0.0
        %597 = vmatpush1.msra.mxu0 0.0
        %598 = vmatprep.subr.mxu0 0.0
        %599 = vmatpush1.msra.mxu0 0.0
        %600 = vmatprep.subr.mxu0 0.0
        %601 = vmatpush1.msra.mxu0 0.0
        %602 = vmatprep.subr.mxu0 0.0
        %603 = vmatpush1.msra.mxu0 0.0
        %604 = vmatprep.subr.mxu0 0.0
        %605 = vmatpush1.msra.mxu0 0.0
        %606 = vmatprep.mubr.f32.mxu0 0.0
        %607 = vmatmul.mubr.f32.gmra.mrb[0].mxu0 %v531
        %v608 = vpop.f32.mrb[0].mxu0
        %v609 = vadd.f32 0.0, %v608
        %v610 = vpop.f32.mrb[0].mxu0
        %611 = vmatprep.mubr.f32.mxu0 0.0
        %612 = vmatmul.mubr.f32.gmra.mrb[0].mxu0 %v534
        %v613 = vpop.f32.mrb[0].mxu0
        %v614 = vadd.f32 0.0, %v613
        %v615 = vpop.f32.mrb[0].mxu0
        %616 = vmatprep.mubr.f32.mxu0 0.0
        %617 = vmatmul.mubr.f32.gmra.mrb[0].mxu0 %v537
        %v618 = vpop.f32.mrb[0].mxu0
        %v619 = vadd.f32 0.0, %v618
        %v620 = vpop.f32.mrb[0].mxu0
        %621 = vmatprep.mubr.f32.mxu0 0.0
        %622 = vmatmul.mubr.f32.gmra.mrb[0].mxu0 %v540
        %v623 = vpop.f32.mrb[0].mxu0
        %v624 = vadd.f32 0.0, %v623
        %v625 = vpop.f32.mrb[0].mxu0
        %626 = vdwg.mxu0
        %v627 = vadd.f32 %v512, %v609
        %v628 = vadd.f32 %v517, %v614
        %v629 = vadd.f32 %v522, %v619
        %v630 = vadd.f32 %v527, %v624
        %632 = vset.pattern.permute.xlu0 0
        %633 = vperm.xlu0 %632, %v399
        %v634 = vpop.permute.xlu0 %633
        %637 = vset.pattern.permute.xlu0 0
        %638 = vperm.xlu0 %637, %v400
        %v639 = vpop.permute.xlu0 %638
        %642 = vset.pattern.permute.xlu0 0
        %643 = vperm.xlu0 %642, %v401
        %v644 = vpop.permute.xlu0 %643
        %647 = vset.pattern.permute.xlu0 0
        %648 = vperm.xlu0 %647, %v402
        %v649 = vpop.permute.xlu0 %648
        %v651 = vadd.f32 %v627, %v634
        %v652 = vadd.f32 %v628, %v639
        %v653 = vadd.f32 %v629, %v644
        %v654 = vadd.f32 %v630, %v649
        %v655 = vld [vmem:[%s330] sm:$0xff]
        %v656 = vld [vmem:[%s330 + $0x8] sm:$0xff]
        %v657 = vld [vmem:[%s330 + $0x10] sm:$0xff]
        %v658 = vld [vmem:[%s330 + $0x18] sm:$0xff]
        %v659 = vadd.f32 %v651, %v655
        %v660 = vadd.f32 %v652, %v656
        %v661 = vadd.f32 %v653, %v657
        %v662 = vadd.f32 %v654, %v658
        %v663 = vsub.f32 %v659, %v424
        %v664 = vsub.f32 %v660, %v425
        %v665 = vsub.f32 %v661, %v426
        %v666 = vsub.f32 %v662, %v427
        %668 = vset.pattern.permute.xlu0 0
        %669 = vperm.xlu0 %668, %v403
        %v670 = vpop.permute.xlu0 %669
        %673 = vset.pattern.permute.xlu0 0
        %674 = vperm.xlu0 %673, %v404
        %v675 = vpop.permute.xlu0 %674
        %678 = vset.pattern.permute.xlu0 0
        %679 = vperm.xlu0 %678, %v405
        %v680 = vpop.permute.xlu0 %679
        %683 = vset.pattern.permute.xlu0 0
        %684 = vperm.xlu0 %683, %v406
        %v685 = vpop.permute.xlu0 %684
        %v687 = vmul.f32 %v670, %v663
        %v688 = vmul.f32 %v675, %v664
        %v689 = vmul.f32 %v680, %v665
        %v690 = vmul.f32 %v685, %v666
        %v691 = vadd.f32 %v687, %v424
        %v692 = vadd.f32 %v688, %v425
        %v693 = vadd.f32 %v689, %v426
        %v694 = vadd.f32 %v690, %v427
        %695 = vst [vmem:[%s371] sm:$0xff] %v691
        %696 = vst [vmem:[%s371 + $0x8] sm:$0xff] %v692
        %697 = vst [vmem:[%s371 + $0x10] sm:$0xff] %v693
        %698 = vst [vmem:[%s371 + $0x18] sm:$0xff] %v694
        %699 = vst [vmem:[%s378] sm:$0xff] %v512
        %700 = vst [vmem:[%s378 + $0x8] sm:$0xff] %v517
        %701 = vst [vmem:[%s378 + $0x10] sm:$0xff] %v522
        %702 = vst [vmem:[%s378 + $0x18] sm:$0xff] %v527
        %703 = vst [vmem:[%s385] sm:$0xff] %v609
        %704 = vst [vmem:[%s385 + $0x8] sm:$0xff] %v614
        %705 = vst [vmem:[%s385 + $0x10] sm:$0xff] %v619
        %706 = vst [vmem:[%s385 + $0x18] sm:$0xff] %v624
        %s707 = sand.u32 %s174, 1
        %s708 = scalar_lea.sflag [#allocation4], %s707
        %s709 = sand.u32 %s174, 1
        %s710 = smul.addr %s709, 32
        %s711 = scalar_lea.vmem [#allocation8], %s710
        %s712 = sand.u32 %s30, 1
        %s713 = scalar_lea.sflag [#allocation10], %s712
        %s714 = sand.u32 %s200, 1
        %s715 = smul.addr %s714, 32
        %s716 = scalar_lea.vmem [#allocation9], %s715
        %s717 = sand.u32 %s30, 1
        %s718 = scalar_lea.sflag [#allocation10], %s717
        %s719 = sand.u32 %s226, 1
        %s720 = smul.addr %s719, 32
        %s721 = scalar_lea.vmem [#allocation11], %s720
        // Predicated region
        $region57: #{tpu_custom_call.1} parent=43 // pred_check
          %p722 = pneg %p184
        $region58: #{tpu_custom_call.1} parent=43 // pred_check_branch
          %724 = sbr.rel (%p722) target = $region60
        $region59: #{tpu_custom_call.1} parent=43 // pred_region
          %s726 = ssub.s32 512, 512
          %727 = vsyncadd %s708, %s726
          %s728 = smul.addr %s30, 4
          %s729 = smul.addr %s728, 128
          %s730 = scalar_lea.hbm %s6, %s729
          %s731 = sshll.u32 %s711, 4
          %s732 = int_to_ptr.vmem [resolvable:$true] %s731
          %737 = dma.vmem_to_hbm [thread:$0]  %s732, 512, %s730, %s708, 128, 128, 8
        $region60: #{tpu_custom_call.1} parent=43 // pred_fallthru
          _
        // Predicated region
        $region61: #{tpu_custom_call.1} parent=43 // pred_check
          %p738 = pneg %p210
        $region62: #{tpu_custom_call.1} parent=43 // pred_check_branch
          %740 = sbr.rel (%p738) target = $region64
        $region63: #{tpu_custom_call.1} parent=43 // pred_region
          %s742 = ssub.s32 512, 512
          %743 = vsyncadd %s713, %s742
          %s744 = smul.addr %s30, 4
          %s745 = smul.addr %s744, 128
          %s746 = scalar_lea.hbm %s7, %s745
          %s747 = sshll.u32 %s716, 4
          %s748 = int_to_ptr.vmem [resolvable:$true] %s747
          %753 = dma.vmem_to_hbm [thread:$0]  %s748, 512, %s746, %s713, 128, 128, 8
        $region64: #{tpu_custom_call.1} parent=43 // pred_fallthru
          _
        // Predicated region
        $region65: #{tpu_custom_call.1} parent=43 // pred_check
          %p754 = pneg %p236
        $region66: #{tpu_custom_call.1} parent=43 // pred_check_branch
          %756 = sbr.rel (%p754) target = $region68
        $region67: #{tpu_custom_call.1} parent=43 // pred_region
          %s758 = ssub.s32 512, 512
          %759 = vsyncadd %s718, %s758
          %s760 = smul.addr %s30, 4
          %s761 = smul.addr %s760, 128
          %s762 = scalar_lea.hbm %s8, %s761
          %s763 = sshll.u32 %s721, 4
          %s764 = int_to_ptr.vmem [resolvable:$true] %s763
          %769 = dma.vmem_to_hbm [thread:$0]  %s764, 512, %s762, %s718, 128, 128, 8
        $region68: #{tpu_custom_call.1} parent=43 // pred_fallthru
          _
      $region44: #{tpu_custom_call.1} parent=5 // pred_fallthru
        _
      %p770 = scmp.le.s32.totalorder 2, %s25
      // Predicated region
      $region69: #{tpu_custom_call.1} parent=5 // pred_check
        %p771 = pneg %p770
      $region70: #{tpu_custom_call.1} parent=5 // pred_check_branch
        %773 = sbr.rel (%p771) target = $region72
      $region71: #{tpu_custom_call.1} parent=5 // pred_region
        %s774 = ssub.s32 %s25, 2
        // Predicated region
        $region73: #{tpu_custom_call.1} parent=71 // pred_check
          %p775 = pneg %p190
        $region74: #{tpu_custom_call.1} parent=71 // pred_check_branch
          %777 = sbr.rel (%p775) target = $region76
        $region75: #{tpu_custom_call.1} parent=71 // pred_region
          %s778 = sand.u32 %s175, 1
          %s779 = scalar_lea.sflag [#allocation4], %s778
          %s780 = sand.u32 %s175, 1
          %s781 = smul.addr %s780, 32
          %s782 = scalar_lea.vmem [#allocation8], %s781
          %783 = dma.done %s779, 512
        $region76: #{tpu_custom_call.1} parent=71 // pred_fallthru
          _
        // Predicated region
        $region77: #{tpu_custom_call.1} parent=71 // pred_check
          %p784 = pneg %p216
        $region78: #{tpu_custom_call.1} parent=71 // pred_check_branch
          %786 = sbr.rel (%p784) target = $region80
        $region79: #{tpu_custom_call.1} parent=71 // pred_region
          %s787 = sand.u32 %s31, 1
          %s788 = scalar_lea.sflag [#allocation10], %s787
          %s789 = sand.u32 %s201, 1
          %s790 = smul.addr %s789, 32
          %s791 = scalar_lea.vmem [#allocation9], %s790
          %792 = dma.done %s788, 512
        $region80: #{tpu_custom_call.1} parent=71 // pred_fallthru
          _
        // Predicated region
        $region81: #{tpu_custom_call.1} parent=71 // pred_check
          %p793 = pneg %p242
        $region82: #{tpu_custom_call.1} parent=71 // pred_check_branch
          %795 = sbr.rel (%p793) target = $region84
        $region83: #{tpu_custom_call.1} parent=71 // pred_region
          %s796 = sand.u32 %s31, 1
          %s797 = scalar_lea.sflag [#allocation10], %s796
          %s798 = sand.u32 %s227, 1
          %s799 = smul.addr %s798, 32
          %s800 = scalar_lea.vmem [#allocation11], %s799
          %801 = dma.done %s797, 512
        $region84: #{tpu_custom_call.1} parent=71 // pred_fallthru
          _
      $region72: #{tpu_custom_call.1} parent=5 // pred_fallthru
        _
    $region6: #{tpu_custom_call.1} parent=1 // loop_footer
      %s29 = sadd.s32 1, %s25
    $region7: #{tpu_custom_call.1} parent=1 // loop_footer_branch
      %24 = sbr.rel target = $region3
    $region8: #{tpu_custom_call.1} parent=1 // loop_exit
      _
    %802 = vsyncpa [#allocation3], 1
    %s803 = scalar_lea.sflag [#allocation3], 1
    %804 = vsyncpa %s803, 1
    %805 = vsyncpa [#allocation6], 1
    %806 = vsyncpa [#allocation4], 1
    %s807 = scalar_lea.sflag [#allocation4], 1
    %808 = vsyncpa %s807, 1
    %809 = vsyncpa [#allocation10], 1
    %s810 = scalar_lea.sflag [#allocation10], 1
    %811 = vsyncpa %s810, 1

// kernel: tpu_custom_call.1
$region0: #{tpu_custom_call.1}
  #allocation0 [shape = 'u32[]', space=smem, size = 0x4, offset = 0x4, fixed_abs, tag = 'smem constant byte address 0x4 - core index']
  #allocation1 [shape = 'u32[144,128]{1,0:T(1,128)}', space=vmem, size = 0x12000, scoped, tag = 'internal scratch']
  %s0 = inlined_call_operand.vmem [shape: f32[2,32,128], index: 0, kind: input, shape index: {}]
  %s1 = inlined_call_operand.hbm [shape: f32[2,32,128], index: 1, kind: input, shape index: {}]
  %s2 = inlined_call_operand.hbm [shape: f32[32,32], index: 2, kind: input, shape index: {}]
  %s3 = inlined_call_operand.hbm [shape: f32[32,32], index: 3, kind: input, shape index: {}]
  %s4 = inlined_call_operand.vmem [shape: f32[32,1], index: 4, kind: input, shape index: {}]
  %s5 = inlined_call_operand.vmem [shape: f32[32,1], index: 5, kind: input, shape index: {}]
  %s6 = inlined_call_operand.hbm [shape: f32[2,32,128], index: 6, kind: output, shape index: {0}]
  %s7 = inlined_call_operand.hbm [shape: f32[2,32,128], index: 7, kind: output, shape index: {1}]
  %s8 = inlined_call_operand.hbm [shape: f32[2,32,128], index: 8, kind: output, shape index: {2}]
  %9 = xla_tuple %s6, %s7, %s8
  %s10 = sld [smem:[#allocation0]]
  $region85: #{tpu_custom_call.1} parent=0
    _
  %s12 = ssub.s32 1, %s10
  %s13 = scalar_select 0, %s12, %s10
  $region1: #{tpu_custom_call.1} parent=0
    #allocation2 [shape = 'u8[32768]{0}', space=vmem, size = 0x8000, scoped, tag = 'input window, operand 1']
    #allocation3 [shape = 's32[2]{0}', space=sflag, size = 0x8, scoped, tag = 'scoped memory for tpu_custom_call.1']
    #allocation4 [shape = 's32[2]{0}', space=sflag, size = 0x8, scoped, tag = 'scoped memory for tpu_custom_call.1']
    #allocation5 [shape = 'u8[16384]{0}', space=vmem, size = 0x4000, scoped, tag = 'input window, operand 2, single buffered']
    #allocation6 [shape = 's32[1]{0}', space=sflag, size = 0x4, scoped, tag = 'scoped memory for tpu_custom_call.1']
    #allocation7 [shape = 'u8[16384]{0}', space=vmem, size = 0x4000, scoped, tag = 'input window, operand 3, single buffered']
    #allocation8 [shape = 'u8[32768]{0}', space=vmem, size = 0x8000, scoped, tag = 'output window, operand 0']
    #allocation9 [shape = 'u8[32768]{0}', space=vmem, size = 0x8000, scoped, tag = 'output window, operand 1']
    #allocation10 [shape = 's32[2]{0}', space=sflag, size = 0x8, scoped, tag = 'scoped memory for tpu_custom_call.1']
    #allocation11 [shape = 'u8[32768]{0}', space=vmem, size = 0x8000, scoped, tag = 'output window, operand 2']
    %14 = vsyncpa [#allocation3], 0
    %s15 = scalar_lea.sflag [#allocation3], 1
    %16 = vsyncpa %s15, 0
    %17 = vsyncpa [#allocation6], 0
    %18 = vsyncpa [#allocation4], 0
    %s19 = scalar_lea.sflag [#allocation4], 1
    %20 = vsyncpa %s19, 0
    %21 = vsyncpa [#allocation10], 0
    %s22 = scalar_lea.sflag [#allocation10], 1
    %23 = vsyncpa %s22, 0
    loop: start=0, step=1, limit=4
    $region2: #{tpu_custom_call.1} parent=1 // loop_pre_header
      _
    $region3: #{tpu_custom_call.1} parent=1 // loop_header
      %s25 = sphi 0, %s29
      %p26 = scmp.ge.s32.totalorder %s25, 4
      %s35 = sphi 0, %s37
      %s38 = sphi 0, %s35
      %s39 = sphi 0, %s38
      %s55 = sphi 0, %s39
      %s61 = sphi 0, %s63
      %s64 = sphi 0, %s61
      %s65 = sphi 0, %s64
      %s81 = sphi 0, %s65
      %s85 = sphi 0, %s85
      %s87 = sphi 0, %s85
      %s88 = sphi 0, %s87
      %s102 = sphi 0, %s88
      %s106 = sphi 0, %s106
      %s108 = sphi 0, %s106
      %s109 = sphi 0, %s108
      %s123 = sphi 0, %s109
      %s127 = sphi 0, %s127
      %s129 = sphi 0, %s127
      %s130 = sphi 0, %s129
      %s144 = sphi 0, %s130
      %s148 = sphi 0, %s148
      %s150 = sphi 0, %s148
      %s151 = sphi 0, %s150
      %s165 = sphi 0, %s151
      %s171 = sphi 0, %s173
      %s174 = sphi 0, %s171
      %s175 = sphi 0, %s174
      %s191 = sphi 0, %s175
      %s197 = sphi 0, %s199
      %s200 = sphi 0, %s197
      %s201 = sphi 0, %s200
      %s217 = sphi 0, %s201
      %s223 = sphi 0, %s225
      %s226 = sphi 0, %s223
      %s227 = sphi 0, %s226
      %s243 = sphi 0, %s227
    $region4: #{tpu_custom_call.1} parent=1 // loop_header_branch
      %28 = sbr.rel (%p26) target = $region8
    $region5: #{tpu_custom_call.1} parent=1 // loop_body
      %s30 = ssub.s32 %s25, 1
      %s31 = ssub.s32 %s25, 2
      %s32 = sadd.s32 %s25, 1
      %s33 = ssub.s32 %s25, %s32
      %p34 = scmp.eq.s32.totalorder %s33, 0
      %s36 = sadd.s32 %s35, 1
      %s37 = scalar_select %p34, %s35, %s36
      %p40 = pneg %p34
      %p41 = scmp.eq.s32.totalorder %s25, 1
      %p42 = por %p40, %p41
      %p43 = scmp.ne.s32.totalorder %s35, %s38
      %p44 = scmp.eq.s32.totalorder %s25, 0
      %p45 = por %p43, %p44
      %p46 = scmp.ne.s32.totalorder %s35, %s38
      %p47 = scmp.eq.s32.totalorder %s30, 1
      %p48 = por %p46, %p47
      %p49 = scmp.ne.s32.totalorder %s38, %s39
      %p50 = scmp.eq.s32.totalorder %s30, 0
      %p51 = por %p49, %p50
      %p52 = scmp.ne.s32.totalorder %s38, %s39
      %p53 = scmp.eq.s32.totalorder %s31, 1
      %p54 = por %p52, %p53
      %p56 = scmp.ne.s32.totalorder %s39, %s55
      %p57 = scmp.eq.s32.totalorder %s31, 0
      %p58 = por %p56, %p57
      %s59 = ssub.s32 %s25, %s32
      %p60 = scmp.eq.s32.totalorder %s59, 0
      %s62 = sadd.s32 %s61, 1
      %s63 = scalar_select %p60, %s61, %s62
      %p66 = pneg %p60
      %p67 = scmp.eq.s32.totalorder %s25, 1
      %p68 = por %p66, %p67
      %p69 = scmp.ne.s32.totalorder %s61, %s64
      %p70 = scmp.eq.s32.totalorder %s25, 0
      %p71 = por %p69, %p70
      %p72 = scmp.ne.s32.totalorder %s61, %s64
      %p73 = scmp.eq.s32.totalorder %s30, 1
      %p74 = por %p72, %p73
      %p75 = scmp.ne.s32.totalorder %s64, %s65
      %p76 = scmp.eq.s32.totalorder %s30, 0
      %p77 = por %p75, %p76
      %p78 = scmp.ne.s32.totalorder %s64, %s65
      %p79 = scmp.eq.s32.totalorder %s31, 1
      %p80 = por %p78, %p79
      %p82 = scmp.ne.s32.totalorder %s65, %s81
      %p83 = scmp.eq.s32.totalorder %s31, 0
      %p84 = por %p82, %p83
      %s86 = sadd.s32 %s85, 1
      %p89 = scmp.eq.s32.totalorder %s25, 1
      %p90 = scmp.ne.s32.totalorder %s85, %s87
      %p91 = scmp.eq.s32.totalorder %s25, 0
      %p92 = por %p90, %p91
      %p93 = scmp.ne.s32.totalorder %s85, %s87
      %p94 = scmp.eq.s32.totalorder %s30, 1
      %p95 = por %p93, %p94
      %p96 = scmp.ne.s32.totalorder %s87, %s88
      %p97 = scmp.eq.s32.totalorder %s30, 0
      %p98 = por %p96, %p97
      %p99 = scmp.ne.s32.totalorder %s87, %s88
      %p100 = scmp.eq.s32.totalorder %s31, 1
      %p101 = por %p99, %p100
      %p103 = scmp.ne.s32.totalorder %s88, %s102
      %p104 = scmp.eq.s32.totalorder %s31, 0
      %p105 = por %p103, %p104
      %s107 = sadd.s32 %s106, 1
      %p110 = scmp.eq.s32.totalorder %s25, 1
      %p111 = scmp.ne.s32.totalorder %s106, %s108
      %p112 = scmp.eq.s32.totalorder %s25, 0
      %p113 = por %p111, %p112
      %p114 = scmp.ne.s32.totalorder %s106, %s108
      %p115 = scmp.eq.s32.totalorder %s30, 1
      %p116 = por %p114, %p115
      %p117 = scmp.ne.s32.totalorder %s108, %s109
      %p118 = scmp.eq.s32.totalorder %s30, 0
      %p119 = por %p117, %p118
      %p120 = scmp.ne.s32.totalorder %s108, %s109
      %p121 = scmp.eq.s32.totalorder %s31, 1
      %p122 = por %p120, %p121
      %p124 = scmp.ne.s32.totalorder %s109, %s123
      %p125 = scmp.eq.s32.totalorder %s31, 0
      %p126 = por %p124, %p125
      %s128 = sadd.s32 %s127, 1
      %p131 = scmp.eq.s32.totalorder %s25, 1
      %p132 = scmp.ne.s32.totalorder %s127, %s129
      %p133 = scmp.eq.s32.totalorder %s25, 0
      %p134 = por %p132, %p133
      %p135 = scmp.ne.s32.totalorder %s127, %s129
      %p136 = scmp.eq.s32.totalorder %s30, 1
      %p137 = por %p135, %p136
      %p138 = scmp.ne.s32.totalorder %s129, %s130
      %p139 = scmp.eq.s32.totalorder %s30, 0
      %p140 = por %p138, %p139
      %p141 = scmp.ne.s32.totalorder %s129, %s130
      %p142 = scmp.eq.s32.totalorder %s31, 1
      %p143 = por %p141, %p142
      %p145 = scmp.ne.s32.totalorder %s130, %s144
      %p146 = scmp.eq.s32.totalorder %s31, 0
      %p147 = por %p145, %p146
      %s149 = sadd.s32 %s148, 1
      %p152 = scmp.eq.s32.totalorder %s25, 1
      %p153 = scmp.ne.s32.totalorder %s148, %s150
      %p154 = scmp.eq.s32.totalorder %s25, 0
      %p155 = por %p153, %p154
      %p156 = scmp.ne.s32.totalorder %s148, %s150
      %p157 = scmp.eq.s32.totalorder %s30, 1
      %p158 = por %p156, %p157
      %p159 = scmp.ne.s32.totalorder %s150, %s151
      %p160 = scmp.eq.s32.totalorder %s30, 0
      %p161 = por %p159, %p160
      %p162 = scmp.ne.s32.totalorder %s150, %s151
      %p163 = scmp.eq.s32.totalorder %s31, 1
      %p164 = por %p162, %p163
      %p166 = scmp.ne.s32.totalorder %s151, %s165
      %p167 = scmp.eq.s32.totalorder %s31, 0
      %p168 = por %p166, %p167
      %s169 = ssub.s32 %s25, %s32
      %p170 = scmp.eq.s32.totalorder %s169, 0
      %s172 = sadd.s32 %s171, 1
      %s173 = scalar_select %p170, %s171, %s172
      %p176 = pneg %p170
      %p177 = scmp.eq.s32.totalorder %s25, 1
      %p178 = por %p176, %p177
      %p179 = scmp.ne.s32.totalorder %s171, %s174
      %p180 = scmp.eq.s32.totalorder %s25, 0
      %p181 = por %p179, %p180
      %p182 = scmp.ne.s32.totalorder %s171, %s174
      %p183 = scmp.eq.s32.totalorder %s30, 1
      %p184 = por %p182, %p183
      %p185 = scmp.ne.s32.totalorder %s174, %s175
      %p186 = scmp.eq.s32.totalorder %s30, 0
      %p187 = por %p185, %p186
      %p188 = scmp.ne.s32.totalorder %s174, %s175
      %p189 = scmp.eq.s32.totalorder %s31, 1
      %p190 = por %p188, %p189
      %p192 = scmp.ne.s32.totalorder %s175, %s191
      %p193 = scmp.eq.s32.totalorder %s31, 0
      %p194 = por %p192, %p193
      %s195 = ssub.s32 %s25, %s32
      %p196 = scmp.eq.s32.totalorder %s195, 0
      %s198 = sadd.s32 %s197, 1
      %s199 = scalar_select %p196, %s197, %s198
      %p202 = pneg %p196
      %p203 = scmp.eq.s32.totalorder %s25, 1
      %p204 = por %p202, %p203
      %p205 = scmp.ne.s32.totalorder %s197, %s200
      %p206 = scmp.eq.s32.totalorder %s25, 0
      %p207 = por %p205, %p206
      %p208 = scmp.ne.s32.totalorder %s197, %s200
      %p209 = scmp.eq.s32.totalorder %s30, 1
      %p210 = por %p208, %p209
      %p211 = scmp.ne.s32.totalorder %s200, %s201
      %p212 = scmp.eq.s32.totalorder %s30, 0
      %p213 = por %p211, %p212
      %p214 = scmp.ne.s32.totalorder %s200, %s201
      %p215 = scmp.eq.s32.totalorder %s31, 1
      %p216 = por %p214, %p215
      %p218 = scmp.ne.s32.totalorder %s201, %s217
      %p219 = scmp.eq.s32.totalorder %s31, 0
      %p220 = por %p218, %p219
      %s221 = ssub.s32 %s25, %s32
      %p222 = scmp.eq.s32.totalorder %s221, 0
      %s224 = sadd.s32 %s223, 1
      %s225 = scalar_select %p222, %s223, %s224
      %p228 = pneg %p222
      %p229 = scmp.eq.s32.totalorder %s25, 1
      %p230 = por %p228, %p229
      %p231 = scmp.ne.s32.totalorder %s223, %s226
      %p232 = scmp.eq.s32.totalorder %s25, 0
      %p233 = por %p231, %p232
      %p234 = scmp.ne.s32.totalorder %s223, %s226
      %p235 = scmp.eq.s32.totalorder %s30, 1
      %p236 = por %p234, %p235
      %p237 = scmp.ne.s32.totalorder %s226, %s227
      %p238 = scmp.eq.s32.totalorder %s30, 0
      %p239 = por %p237, %p238
      %p240 = scmp.ne.s32.totalorder %s226, %s227
      %p241 = scmp.eq.s32.totalorder %s31, 1
      %p242 = por %p240, %p241
      %p244 = scmp.ne.s32.totalorder %s227, %s243
      %p245 = scmp.eq.s32.totalorder %s31, 0
      %p246 = por %p244, %p245
      %p247 = scmp.le.s32.totalorder 1, %s25
      %p248 = scmp.lt.s32.totalorder %s25, 3
      %p249 = pnand %p247, %p248
      %p250 = pneg %p249
      // Predicated region
      $region9: #{tpu_custom_call.1} parent=5 // pred_check
        _
      $region10: #{tpu_custom_call.1} parent=5 // pred_check_branch
        %252 = sbr.rel (%p249) target = $region12
      $region11: #{tpu_custom_call.1} parent=5 // pred_region
        %s253 = ssub.s32 %s25, 1
        // Predicated region
        $region13: #{tpu_custom_call.1} parent=11 // pred_check
          %p254 = pneg %p98
        $region14: #{tpu_custom_call.1} parent=11 // pred_check_branch
          %256 = sbr.rel (%p254) target = $region16
        $region15: #{tpu_custom_call.1} parent=11 // pred_region
          %s258 = ssub.s32 512, 512
          %259 = vsyncadd [#allocation6], %s258
          %s260 = sshll.u32 [#allocation5], 4
          %s261 = int_to_ptr.vmem [resolvable:$true] %s260
          %266 = dma.hbm_to_vmem [thread:$0]  %s2, 512, %s261, [#allocation6], 128, 128, 8
        $region16: #{tpu_custom_call.1} parent=11 // pred_fallthru
          _
        // Predicated region
        $region17: #{tpu_custom_call.1} parent=11 // pred_check
          %p267 = pneg %p119
        $region18: #{tpu_custom_call.1} parent=11 // pred_check_branch
          %269 = sbr.rel (%p267) target = $region20
        $region19: #{tpu_custom_call.1} parent=11 // pred_region
          %s271 = ssub.s32 512, 512
          %272 = vsyncadd [#allocation6], %s271
          %s273 = sshll.u32 [#allocation7], 4
          %s274 = int_to_ptr.vmem [resolvable:$true] %s273
          %279 = dma.hbm_to_vmem [thread:$0]  %s3, 512, %s274, [#allocation6], 128, 128, 8
        $region20: #{tpu_custom_call.1} parent=11 // pred_fallthru
          _
        // Predicated region
        $region21: #{tpu_custom_call.1} parent=11 // pred_check
          %p280 = pneg %p140
        $region22: #{tpu_custom_call.1} parent=11 // pred_check_branch
          %282 = sbr.rel (%p280) target = $region24
        $region23: #{tpu_custom_call.1} parent=11 // pred_region
          _
        $region24: #{tpu_custom_call.1} parent=11 // pred_fallthru
          _
        // Predicated region
        $region25: #{tpu_custom_call.1} parent=11 // pred_check
          %p283 = pneg %p161
        $region26: #{tpu_custom_call.1} parent=11 // pred_check_branch
          %285 = sbr.rel (%p283) target = $region28
        $region27: #{tpu_custom_call.1} parent=11 // pred_region
          _
        $region28: #{tpu_custom_call.1} parent=11 // pred_fallthru
          _
      $region12: #{tpu_custom_call.1} parent=5 // pred_fallthru
        _
      %p286 = scmp.lt.s32.totalorder %s25, 2
      // Predicated region
      $region29: #{tpu_custom_call.1} parent=5 // pred_check
        %p287 = pneg %p286
      $region30: #{tpu_custom_call.1} parent=5 // pred_check_branch
        %289 = sbr.rel (%p287) target = $region32
      $region31: #{tpu_custom_call.1} parent=5 // pred_region
        // Predicated region
        $region33: #{tpu_custom_call.1} parent=31 // pred_check
          %p290 = pneg %p45
        $region34: #{tpu_custom_call.1} parent=31 // pred_check_branch
          %292 = sbr.rel (%p290) target = $region36
        $region35: #{tpu_custom_call.1} parent=31 // pred_region
          %p293 = scmp.lt.s32.totalorder %s25, 1
          %s294 = scalar_select %p293, %s25, 1
          %s295 = smul.addr %s294, 4
          %s296 = smul.addr %s295, 8
          %s297 = scalar_lea.vmem %s0, %s296
        $region36: #{tpu_custom_call.1} parent=31 // pred_fallthru
          _
        // Predicated region
        $region37: #{tpu_custom_call.1} parent=31 // pred_check
          %p298 = pneg %p71
        $region38: #{tpu_custom_call.1} parent=31 // pred_check_branch
          %300 = sbr.rel (%p298) target = $region40
        $region39: #{tpu_custom_call.1} parent=31 // pred_region
          %s301 = sand.u32 %s61, 1
          %s302 = scalar_lea.sflag [#allocation3], %s301
          %s303 = sand.u32 %s61, 1
          %s304 = smul.addr %s303, 32
          %s305 = scalar_lea.vmem [#allocation2], %s304
          %s307 = ssub.s32 512, 512
          %308 = vsyncadd %s302, %s307
          %s309 = smul.addr %s25, 4
          %s310 = smul.addr %s309, 128
          %s311 = scalar_lea.hbm %s1, %s310
          %s312 = sshll.u32 %s305, 4
          %s313 = int_to_ptr.vmem [resolvable:$true] %s312
          %318 = dma.hbm_to_vmem [thread:$0]  %s311, 512, %s313, %s302, 128, 128, 8
        $region40: #{tpu_custom_call.1} parent=31 // pred_fallthru
          _
      $region32: #{tpu_custom_call.1} parent=5 // pred_fallthru
        _
      %p319 = scmp.le.s32.totalorder 1, %s25
      %p320 = scmp.lt.s32.totalorder %s25, 3
      %p321 = pnand %p319, %p320
      %p322 = pneg %p321
      // Predicated region
      $region41: #{tpu_custom_call.1} parent=5 // pred_check
        _
      $region42: #{tpu_custom_call.1} parent=5 // pred_check_branch
        %324 = sbr.rel (%p321) target = $region44
      $region43: #{tpu_custom_call.1} parent=5 // pred_region
        %s325 = ssub.s32 %s25, 1
        %s326 = sand.u32 %s64, 1
        %s327 = scalar_lea.sflag [#allocation3], %s326
        %s328 = sand.u32 %s64, 1
        %s329 = smul.addr %s328, 32
        %s330 = scalar_lea.vmem [#allocation2], %s329
        // Predicated region
        $region45: #{tpu_custom_call.1} parent=43 // pred_check
          %p331 = pneg %p77
        $region46: #{tpu_custom_call.1} parent=43 // pred_check_branch
          %333 = sbr.rel (%p331) target = $region48
        $region47: #{tpu_custom_call.1} parent=43 // pred_region
          %334 = dma.done %s327, 512
        $region48: #{tpu_custom_call.1} parent=43 // pred_fallthru
          _
        // Predicated region
        $region49: #{tpu_custom_call.1} parent=43 // pred_check
          %p335 = pneg %p98
        $region50: #{tpu_custom_call.1} parent=43 // pred_check_branch
          %337 = sbr.rel (%p335) target = $region52
        $region51: #{tpu_custom_call.1} parent=43 // pred_region
          %338 = dma.done [#allocation6], 512
        $region52: #{tpu_custom_call.1} parent=43 // pred_fallthru
          _
        // Predicated region
        $region53: #{tpu_custom_call.1} parent=43 // pred_check
          %p339 = pneg %p119
        $region54: #{tpu_custom_call.1} parent=43 // pred_check_branch
          %341 = sbr.rel (%p339) target = $region56
        $region55: #{tpu_custom_call.1} parent=43 // pred_region
          %342 = dma.done [#allocation6], 512
        $region56: #{tpu_custom_call.1} parent=43 // pred_fallthru
          _
        %p343 = scmp.lt.s32.totalorder %s30, 1
        %s344 = scalar_select %p343, %s30, 1
        %s345 = smul.addr %s344, 4
        %s346 = smul.addr %s345, 8
        %s347 = scalar_lea.vmem %s0, %s346
        %p348 = pneg %p51
        %p349 = pneg %p48
        %s350 = sand.u32 %s64, 1
        %s351 = scalar_lea.sflag [#allocation3], %s350
        %s352 = sand.u32 %s64, 1
        %s353 = smul.addr %s352, 32
        %s354 = scalar_lea.vmem [#allocation2], %s353
        %p355 = pneg %p77
        %p356 = pneg %p74
        %p357 = pneg %p98
        %p358 = pneg %p95
        %p359 = pneg %p119
        %p360 = pneg %p116
        %p361 = pneg %p140
        %p362 = pneg %p137
        %p363 = pneg %p161
        %p364 = pneg %p158
        %p365 = pneg %p187
        %p366 = pneg %p184
        %s367 = sand.u32 %s174, 1
        %s368 = scalar_lea.sflag [#allocation4], %s367
        %s369 = sand.u32 %s174, 1
        %s370 = smul.addr %s369, 32
        %s371 = scalar_lea.vmem [#allocation8], %s370
        %p372 = pneg %p213
        %p373 = pneg %p210
        %s374 = sand.u32 %s30, 1
        %s375 = scalar_lea.sflag [#allocation10], %s374
        %s376 = sand.u32 %s200, 1
        %s377 = smul.addr %s376, 32
        %s378 = scalar_lea.vmem [#allocation9], %s377
        %p379 = pneg %p239
        %p380 = pneg %p236
        %s381 = sand.u32 %s30, 1
        %s382 = scalar_lea.sflag [#allocation10], %s381
        %s383 = sand.u32 %s226, 1
        %s384 = smul.addr %s383, 32
        %s385 = scalar_lea.vmem [#allocation11], %s384
        %p386 = scmp.lt.s32.totalorder %s30, 1
        %s387 = scalar_select %p386, %s30, 1
        %s388 = smul.addr %s387, 4
        %s389 = smul.addr %s388, 8
        %s390 = scalar_lea.vmem %s0, %s389
        %v391 = vld [vmem:[#allocation5] sm:$0xff]
        %v392 = vld [vmem:[#allocation5 + $0x8] sm:$0xff]
        %v393 = vld [vmem:[#allocation5 + $0x10] sm:$0xff]
        %v394 = vld [vmem:[#allocation5 + $0x18] sm:$0xff]
        %v395 = vld [vmem:[#allocation7] sm:$0xff]
        %v396 = vld [vmem:[#allocation7 + $0x8] sm:$0xff]
        %v397 = vld [vmem:[#allocation7 + $0x10] sm:$0xff]
        %v398 = vld [vmem:[#allocation7 + $0x18] sm:$0xff]
        %v399 = vld [vmem:[%s4] sm:$0xff]
        %v400 = vld [vmem:[%s4 + $0x8] sm:$0xff]
        %v401 = vld [vmem:[%s4 + $0x10] sm:$0xff]
        %v402 = vld [vmem:[%s4 + $0x18] sm:$0xff]
        %v403 = vld [vmem:[%s5] sm:$0xff]
        %v404 = vld [vmem:[%s5 + $0x8] sm:$0xff]
        %v405 = vld [vmem:[%s5 + $0x10] sm:$0xff]
        %v406 = vld [vmem:[%s5 + $0x18] sm:$0xff]
        %v407 = vlaneseq
        %v408 = vand.u32 %v407, 127
        %vm409 = vcmp.eq.s32.totalorder %v408, 0
        %v410 = vld [vmem:[%s390] sm:$0xff]
        %v411 = vld [vmem:[%s390 + $0x8] sm:$0xff]
        %v412 = vld [vmem:[%s390 + $0x10] sm:$0xff]
        %v413 = vld [vmem:[%s390 + $0x18] sm:$0xff]
        %414 = vrot.lane.b32.xlu0 %v410, 1
        %v415 = vpop.permute.xlu0 %414
        %416 = vrot.lane.b32.xlu0 %v411, 1
        %v417 = vpop.permute.xlu0 %416
        %418 = vrot.lane.b32.xlu0 %v412, 1
        %v419 = vpop.permute.xlu0 %418
        %420 = vrot.lane.b32.xlu0 %v413, 1
        %v421 = vpop.permute.xlu0 %420
        %v422 = vsel %vm409, 1, 0
        %vm423 = vcmp.eq.s32.totalorder %v422, 1
        %v424 = vsel %vm423, 0.0, %v415
        %v425 = vsel %vm423, 0.0, %v417
        %v426 = vsel %vm423, 0.0, %v419
        %v427 = vsel %vm423, 0.0, %v421
        %v428 = vmax.f32 %v424, 0.0
        %v429 = vmax.f32 %v425, 0.0
        %v430 = vmax.f32 %v426, 0.0
        %v431 = vmax.f32 %v427, 0.0
        %vm432 = vcmask 261120
        %v434 = vsel %vm432, %v391, 0
        %v437 = vsel %vm432, %v392, 0
        %v440 = vsel %vm432, %v393, 0
        %v443 = vsel %vm432, %v394, 0
        %445 = vmatprep.subr.mxu0 0.0
        %446 = vmatpush1.msra.mxu0 %v428
        %447 = vmatprep.subr.mxu0 0.0
        %448 = vmatpush1.msra.mxu0 %v429
        %449 = vmatprep.subr.mxu0 0.0
        %450 = vmatpush1.msra.mxu0 %v430
        %451 = vmatprep.subr.mxu0 0.0
        %452 = vmatpush1.msra.mxu0 %v431
        %453 = vmatprep.subr.mxu0 0.0
        %454 = vmatpush1.msra.mxu0 0.0
        %455 = vmatprep.subr.mxu0 0.0
        %456 = vmatpush1.msra.mxu0 0.0
        %457 = vmatprep.subr.mxu0 0.0
        %458 = vmatpush1.msra.mxu0 0.0
        %459 = vmatprep.subr.mxu0 0.0
        %460 = vmatpush1.msra.mxu0 0.0
        %461 = vmatprep.subr.mxu0 0.0
        %462 = vmatpush1.msra.mxu0 0.0
        %463 = vmatprep.subr.mxu0 0.0
        %464 = vmatpush1.msra.mxu0 0.0
        %465 = vmatprep.subr.mxu0 0.0
        %466 = vmatpush1.msra.mxu0 0.0
        %467 = vmatprep.subr.mxu0 0.0
        %468 = vmatpush1.msra.mxu0 0.0
        %469 = vmatprep.subr.mxu0 0.0
        %470 = vmatpush1.msra.mxu0 0.0
        %471 = vmatprep.subr.mxu0 0.0
        %472 = vmatpush1.msra.mxu0 0.0
        %473 = vmatprep.subr.mxu0 0.0
        %474 = vmatpush1.msra.mxu0 0.0
        %475 = vmatprep.subr.mxu0 0.0
        %476 = vmatpush1.msra.mxu0 0.0
        %477 = vmatprep.subr.mxu0 0.0
        %478 = vmatpush1.msra.mxu0 0.0
        %479 = vmatprep.subr.mxu0 0.0
        %480 = vmatpush1.msra.mxu0 0.0
        %481 = vmatprep.subr.mxu0 0.0
        %482 = vmatpush1.msra.mxu0 0.0
        %483 = vmatprep.subr.mxu0 0.0
        %484 = vmatpush1.msra.mxu0 0.0
        %485 = vmatprep.subr.mxu0 0.0
        %486 = vmatpush1.msra.mxu0 0.0
        %487 = vmatprep.subr.mxu0 0.0
        %488 = vmatpush1.msra.mxu0 0.0
        %489 = vmatprep.subr.mxu0 0.0
        %490 = vmatpush1.msra.mxu0 0.0
        %491 = vmatprep.subr.mxu0 0.0
        %492 = vmatpush1.msra.mxu0 0.0
        %493 = vmatprep.subr.mxu0 0.0
        %494 = vmatpush1.msra.mxu0 0.0
        %495 = vmatprep.subr.mxu0 0.0
        %496 = vmatpush1.msra.mxu0 0.0
        %497 = vmatprep.subr.mxu0 0.0
        %498 = vmatpush1.msra.mxu0 0.0
        %499 = vmatprep.subr.mxu0 0.0
        %500 = vmatpush1.msra.mxu0 0.0
        %501 = vmatprep.subr.mxu0 0.0
        %502 = vmatpush1.msra.mxu0 0.0
        %503 = vmatprep.subr.mxu0 0.0
        %504 = vmatpush1.msra.mxu0 0.0
        %505 = vmatprep.subr.mxu0 0.0
        %506 = vmatpush1.msra.mxu0 0.0
        %507 = vmatprep.subr.mxu0 0.0
        %508 = vmatpush1.msra.mxu0 0.0
        %509 = vmatprep.mubr.f32.mxu0 0.0
        %510 = vmatmul.mubr.f32.gmra.mrb[0].mxu0 %v434
        %v511 = vpop.f32.mrb[0].mxu0
        %v512 = vadd.f32 0.0, %v511
        %v513 = vpop.f32.mrb[0].mxu0
        %514 = vmatprep.mubr.f32.mxu0 0.0
        %515 = vmatmul.mubr.f32.gmra.mrb[0].mxu0 %v437
        %v516 = vpop.f32.mrb[0].mxu0
        %v517 = vadd.f32 0.0, %v516
        %v518 = vpop.f32.mrb[0].mxu0
        %519 = vmatprep.mubr.f32.mxu0 0.0
        %520 = vmatmul.mubr.f32.gmra.mrb[0].mxu0 %v440
        %v521 = vpop.f32.mrb[0].mxu0
        %v522 = vadd.f32 0.0, %v521
        %v523 = vpop.f32.mrb[0].mxu0
        %524 = vmatprep.mubr.f32.mxu0 0.0
        %525 = vmatmul.mubr.f32.gmra.mrb[0].mxu0 %v443
        %v526 = vpop.f32.mrb[0].mxu0
        %v527 = vadd.f32 0.0, %v526
        %v528 = vpop.f32.mrb[0].mxu0
        %529 = vdwg.mxu0
        %v531 = vsel %vm432, %v395, 0
        %v534 = vsel %vm432, %v396, 0
        %v537 = vsel %vm432, %v397, 0
        %v540 = vsel %vm432, %v398, 0
        %542 = vmatprep.subr.mxu0 0.0
        %543 = vmatpush1.msra.mxu0 %v424
        %544 = vmatprep.subr.mxu0 0.0
        %545 = vmatpush1.msra.mxu0 %v425
        %546 = vmatprep.subr.mxu0 0.0
        %547 = vmatpush1.msra.mxu0 %v426
        %548 = vmatprep.subr.mxu0 0.0
        %549 = vmatpush1.msra.mxu0 %v427
        %550 = vmatprep.subr.mxu0 0.0
        %551 = vmatpush1.msra.mxu0 0.0
        %552 = vmatprep.subr.mxu0 0.0
        %553 = vmatpush1.msra.mxu0 0.0
        %554 = vmatprep.subr.mxu0 0.0
        %555 = vmatpush1.msra.mxu0 0.0
        %556 = vmatprep.subr.mxu0 0.0
        %557 = vmatpush1.msra.mxu0 0.0
        %558 = vmatprep.subr.mxu0 0.0
        %559 = vmatpush1.msra.mxu0 0.0
        %560 = vmatprep.subr.mxu0 0.0
        %561 = vmatpush1.msra.mxu0 0.0
        %562 = vmatprep.subr.mxu0 0.0
        %563 = vmatpush1.msra.mxu0 0.0
        %564 = vmatprep.subr.mxu0 0.0
        %565 = vmatpush1.msra.mxu0 0.0
        %566 = vmatprep.subr.mxu0 0.0
        %567 = vmatpush1.msra.mxu0 0.0
        %568 = vmatprep.subr.mxu0 0.0
        %569 = vmatpush1.msra.mxu0 0.0
        %570 = vmatprep.subr.mxu0 0.0
        %571 = vmatpush1.msra.mxu0 0.0
        %572 = vmatprep.subr.mxu0 0.0
        %573 = vmatpush1.msra.mxu0 0.0
        %574 = vmatprep.subr.mxu0 0.0
        %575 = vmatpush1.msra.mxu0 0.0
        %576 = vmatprep.subr.mxu0 0.0
        %577 = vmatpush1.msra.mxu0 0.0
        %578 = vmatprep.subr.mxu0 0.0
        %579 = vmatpush1.msra.mxu0 0.0
        %580 = vmatprep.subr.mxu0 0.0
        %581 = vmatpush1.msra.mxu0 0.0
        %582 = vmatprep.subr.mxu0 0.0
        %583 = vmatpush1.msra.mxu0 0.0
        %584 = vmatprep.subr.mxu0 0.0
        %585 = vmatpush1.msra.mxu0 0.0
        %586 = vmatprep.subr.mxu0 0.0
        %587 = vmatpush1.msra.mxu0 0.0
        %588 = vmatprep.subr.mxu0 0.0
        %589 = vmatpush1.msra.mxu0 0.0
        %590 = vmatprep.subr.mxu0 0.0
        %591 = vmatpush1.msra.mxu0 0.0
        %592 = vmatprep.subr.mxu0 0.0
        %593 = vmatpush1.msra.mxu0 0.0
        %594 = vmatprep.subr.mxu0 0.0
        %595 = vmatpush1.msra.mxu0 0.0
        %596 = vmatprep.subr.mxu0 0.0
        %597 = vmatpush1.msra.mxu0 0.0
        %598 = vmatprep.subr.mxu0 0.0
        %599 = vmatpush1.msra.mxu0 0.0
        %600 = vmatprep.subr.mxu0 0.0
        %601 = vmatpush1.msra.mxu0 0.0
        %602 = vmatprep.subr.mxu0 0.0
        %603 = vmatpush1.msra.mxu0 0.0
        %604 = vmatprep.subr.mxu0 0.0
        %605 = vmatpush1.msra.mxu0 0.0
        %606 = vmatprep.mubr.f32.mxu0 0.0
        %607 = vmatmul.mubr.f32.gmra.mrb[0].mxu0 %v531
        %v608 = vpop.f32.mrb[0].mxu0
        %v609 = vadd.f32 0.0, %v608
        %v610 = vpop.f32.mrb[0].mxu0
        %611 = vmatprep.mubr.f32.mxu0 0.0
        %612 = vmatmul.mubr.f32.gmra.mrb[0].mxu0 %v534
        %v613 = vpop.f32.mrb[0].mxu0
        %v614 = vadd.f32 0.0, %v613
        %v615 = vpop.f32.mrb[0].mxu0
        %616 = vmatprep.mubr.f32.mxu0 0.0
        %617 = vmatmul.mubr.f32.gmra.mrb[0].mxu0 %v537
        %v618 = vpop.f32.mrb[0].mxu0
        %v619 = vadd.f32 0.0, %v618
        %v620 = vpop.f32.mrb[0].mxu0
        %621 = vmatprep.mubr.f32.mxu0 0.0
        %622 = vmatmul.mubr.f32.gmra.mrb[0].mxu0 %v540
        %v623 = vpop.f32.mrb[0].mxu0
        %v624 = vadd.f32 0.0, %v623
        %v625 = vpop.f32.mrb[0].mxu0
        %626 = vdwg.mxu0
        %v627 = vadd.f32 %v512, %v609
        %v628 = vadd.f32 %v517, %v614
        %v629 = vadd.f32 %v522, %v619
        %v630 = vadd.f32 %v527, %v624
        %632 = vset.pattern.permute.xlu0 0
        %633 = vperm.xlu0 %632, %v399
        %v634 = vpop.permute.xlu0 %633
        %637 = vset.pattern.permute.xlu0 0
        %638 = vperm.xlu0 %637, %v400
        %v639 = vpop.permute.xlu0 %638
        %642 = vset.pattern.permute.xlu0 0
        %643 = vperm.xlu0 %642, %v401
        %v644 = vpop.permute.xlu0 %643
        %647 = vset.pattern.permute.xlu0 0
        %648 = vperm.xlu0 %647, %v402
        %v649 = vpop.permute.xlu0 %648
        %v651 = vadd.f32 %v627, %v634
        %v652 = vadd.f32 %v628, %v639
        %v653 = vadd.f32 %v629, %v644
        %v654 = vadd.f32 %v630, %v649
        %v655 = vld [vmem:[%s330] sm:$0xff]
        %v656 = vld [vmem:[%s330 + $0x8] sm:$0xff]
        %v657 = vld [vmem:[%s330 + $0x10] sm:$0xff]
        %v658 = vld [vmem:[%s330 + $0x18] sm:$0xff]
        %v659 = vadd.f32 %v651, %v655
        %v660 = vadd.f32 %v652, %v656
        %v661 = vadd.f32 %v653, %v657
        %v662 = vadd.f32 %v654, %v658
        %v663 = vsub.f32 %v659, %v424
        %v664 = vsub.f32 %v660, %v425
        %v665 = vsub.f32 %v661, %v426
        %v666 = vsub.f32 %v662, %v427
        %668 = vset.pattern.permute.xlu0 0
        %669 = vperm.xlu0 %668, %v403
        %v670 = vpop.permute.xlu0 %669
        %673 = vset.pattern.permute.xlu0 0
        %674 = vperm.xlu0 %673, %v404
        %v675 = vpop.permute.xlu0 %674
        %678 = vset.pattern.permute.xlu0 0
        %679 = vperm.xlu0 %678, %v405
        %v680 = vpop.permute.xlu0 %679
        %683 = vset.pattern.permute.xlu0 0
        %684 = vperm.xlu0 %683, %v406
        %v685 = vpop.permute.xlu0 %684
        %v687 = vmul.f32 %v670, %v663
        %v688 = vmul.f32 %v675, %v664
        %v689 = vmul.f32 %v680, %v665
        %v690 = vmul.f32 %v685, %v666
        %v691 = vadd.f32 %v687, %v424
        %v692 = vadd.f32 %v688, %v425
        %v693 = vadd.f32 %v689, %v426
        %v694 = vadd.f32 %v690, %v427
        %695 = vst [vmem:[%s371] sm:$0xff] %v691
        %696 = vst [vmem:[%s371 + $0x8] sm:$0xff] %v692
        %697 = vst [vmem:[%s371 + $0x10] sm:$0xff] %v693
        %698 = vst [vmem:[%s371 + $0x18] sm:$0xff] %v694
        %699 = vst [vmem:[%s378] sm:$0xff] %v512
        %700 = vst [vmem:[%s378 + $0x8] sm:$0xff] %v517
        %701 = vst [vmem:[%s378 + $0x10] sm:$0xff] %v522
        %702 = vst [vmem:[%s378 + $0x18] sm:$0xff] %v527
        %703 = vst [vmem:[%s385] sm:$0xff] %v609
        %704 = vst [vmem:[%s385 + $0x8] sm:$0xff] %v614
        %705 = vst [vmem:[%s385 + $0x10] sm:$0xff] %v619
        %706 = vst [vmem:[%s385 + $0x18] sm:$0xff] %v624
        %s707 = sand.u32 %s174, 1
        %s708 = scalar_lea.sflag [#allocation4], %s707
        %s709 = sand.u32 %s174, 1
        %s710 = smul.addr %s709, 32
        %s711 = scalar_lea.vmem [#allocation8], %s710
        %s712 = sand.u32 %s30, 1
        %s713 = scalar_lea.sflag [#allocation10], %s712
        %s714 = sand.u32 %s200, 1
        %s715 = smul.addr %s714, 32
        %s716 = scalar_lea.vmem [#allocation9], %s715
        %s717 = sand.u32 %s30, 1
        %s718 = scalar_lea.sflag [#allocation10], %s717
        %s719 = sand.u32 %s226, 1
        %s720 = smul.addr %s719, 32
        %s721 = scalar_lea.vmem [#allocation11], %s720
        // Predicated region
        $region57: #{tpu_custom_call.1} parent=43 // pred_check
          %p722 = pneg %p184
        $region58: #{tpu_custom_call.1} parent=43 // pred_check_branch
          %724 = sbr.rel (%p722) target = $region60
        $region59: #{tpu_custom_call.1} parent=43 // pred_region
          %s726 = ssub.s32 512, 512
          %727 = vsyncadd %s708, %s726
          %s728 = smul.addr %s30, 4
          %s729 = smul.addr %s728, 128
          %s730 = scalar_lea.hbm %s6, %s729
          %s731 = sshll.u32 %s711, 4
          %s732 = int_to_ptr.vmem [resolvable:$true] %s731
          %737 = dma.vmem_to_hbm [thread:$0]  %s732, 512, %s730, %s708, 128, 128, 8
        $region60: #{tpu_custom_call.1} parent=43 // pred_fallthru
          _
        // Predicated region
        $region61: #{tpu_custom_call.1} parent=43 // pred_check
          %p738 = pneg %p210
        $region62: #{tpu_custom_call.1} parent=43 // pred_check_branch
          %740 = sbr.rel (%p738) target = $region64
        $region63: #{tpu_custom_call.1} parent=43 // pred_region
          %s742 = ssub.s32 512, 512
          %743 = vsyncadd %s713, %s742
          %s744 = smul.addr %s30, 4
          %s745 = smul.addr %s744, 128
          %s746 = scalar_lea.hbm %s7, %s745
          %s747 = sshll.u32 %s716, 4
          %s748 = int_to_ptr.vmem [resolvable:$true] %s747
          %753 = dma.vmem_to_hbm [thread:$0]  %s748, 512, %s746, %s713, 128, 128, 8
        $region64: #{tpu_custom_call.1} parent=43 // pred_fallthru
          _
        // Predicated region
        $region65: #{tpu_custom_call.1} parent=43 // pred_check
          %p754 = pneg %p236
        $region66: #{tpu_custom_call.1} parent=43 // pred_check_branch
          %756 = sbr.rel (%p754) target = $region68
        $region67: #{tpu_custom_call.1} parent=43 // pred_region
          %s758 = ssub.s32 512, 512
          %759 = vsyncadd %s718, %s758
          %s760 = smul.addr %s30, 4
          %s761 = smul.addr %s760, 128
          %s762 = scalar_lea.hbm %s8, %s761
          %s763 = sshll.u32 %s721, 4
          %s764 = int_to_ptr.vmem [resolvable:$true] %s763
          %769 = dma.vmem_to_hbm [thread:$0]  %s764, 512, %s762, %s718, 128, 128, 8
        $region68: #{tpu_custom_call.1} parent=43 // pred_fallthru
          _
      $region44: #{tpu_custom_call.1} parent=5 // pred_fallthru
        _
      %p770 = scmp.le.s32.totalorder 2, %s25
      // Predicated region
      $region69: #{tpu_custom_call.1} parent=5 // pred_check
        %p771 = pneg %p770
      $region70: #{tpu_custom_call.1} parent=5 // pred_check_branch
        %773 = sbr.rel (%p771) target = $region72
      $region71: #{tpu_custom_call.1} parent=5 // pred_region
        %s774 = ssub.s32 %s25, 2
        // Predicated region
        $region73: #{tpu_custom_call.1} parent=71 // pred_check
          %p775 = pneg %p190
        $region74: #{tpu_custom_call.1} parent=71 // pred_check_branch
          %777 = sbr.rel (%p775) target = $region76
        $region75: #{tpu_custom_call.1} parent=71 // pred_region
          %s778 = sand.u32 %s175, 1
          %s779 = scalar_lea.sflag [#allocation4], %s778
          %s780 = sand.u32 %s175, 1
          %s781 = smul.addr %s780, 32
          %s782 = scalar_lea.vmem [#allocation8], %s781
          %783 = dma.done %s779, 512
        $region76: #{tpu_custom_call.1} parent=71 // pred_fallthru
          _
        // Predicated region
        $region77: #{tpu_custom_call.1} parent=71 // pred_check
          %p784 = pneg %p216
        $region78: #{tpu_custom_call.1} parent=71 // pred_check_branch
          %786 = sbr.rel (%p784) target = $region80
        $region79: #{tpu_custom_call.1} parent=71 // pred_region
          %s787 = sand.u32 %s31, 1
          %s788 = scalar_lea.sflag [#allocation10], %s787
          %s789 = sand.u32 %s201, 1
          %s790 = smul.addr %s789, 32
          %s791 = scalar_lea.vmem [#allocation9], %s790
          %792 = dma.done %s788, 512
        $region80: #{tpu_custom_call.1} parent=71 // pred_fallthru
          _
        // Predicated region
        $region81: #{tpu_custom_call.1} parent=71 // pred_check
          %p793 = pneg %p242
        $region82: #{tpu_custom_call.1} parent=71 // pred_check_branch
          %795 = sbr.rel (%p793) target = $region84
        $region83: #{tpu_custom_call.1} parent=71 // pred_region
          %s796 = sand.u32 %s31, 1
          %s797 = scalar_lea.sflag [#allocation10], %s796
          %s798 = sand.u32 %s227, 1
          %s799 = smul.addr %s798, 32
          %s800 = scalar_lea.vmem [#allocation11], %s799
          %801 = dma.done %s797, 512
        $region84: #{tpu_custom_call.1} parent=71 // pred_fallthru
          _
      $region72: #{tpu_custom_call.1} parent=5 // pred_fallthru
        _
    $region6: #{tpu_custom_call.1} parent=1 // loop_footer
      %s29 = sadd.s32 1, %s25
    $region7: #{tpu_custom_call.1} parent=1 // loop_footer_branch
      %24 = sbr.rel target = $region3
    $region8: #{tpu_custom_call.1} parent=1 // loop_exit
      _
    %802 = vsyncpa [#allocation3], 1
    %s803 = scalar_lea.sflag [#allocation3], 1
    %804 = vsyncpa %s803, 1
    %805 = vsyncpa [#allocation6], 1
    %806 = vsyncpa [#allocation4], 1
    %s807 = scalar_lea.sflag [#allocation4], 1
    %808 = vsyncpa %s807, 1
    %809 = vsyncpa [#allocation10], 1
    %s810 = scalar_lea.sflag [#allocation10], 1
    %811 = vsyncpa %s810, 1

</llo_original>
